<compile_context>
chip_gen: v7x
topology: tpu7x:2x2x1
jax: 0.10.0
libtpu: 0.0.40
codegen_flags: <defaults>
</compile_context>

<pallas_src>
import jax
import jax.numpy as jnp
from jax.experimental import pallas as pl
from jax.experimental.pallas import tpu as pltpu


# ---------------------------------------------------------------------------
# helpers
# ---------------------------------------------------------------------------

def _round_up(v, m):
    return (v + m - 1) // m * m


def _pick_tk(f_in, target=2048, min_ok=1024):
    """K tile: prefer a multiple-of-128 divisor of F_in near `target` (no image pad)."""
    f_al = _round_up(f_in, 128)
    if f_al <= target:
        return f_al
    if f_in % 128 == 0:
        for cand in range(target, min_ok - 1, -128):
            if f_in % cand == 0:
                return cand
    return target  # fall back; image/weight padded along K


def _pick_tm(batch, tm=None):
    """Batch tile: 256 for big batches (weight-byte amortization / MXU row width).

    For B >= 512 this still leaves B_pad//TM >= 2 batch tiles so the "parallel"
    axis can engage both v7x TensorCores; small batches stay sublane-aligned.
    """
    if tm is not None:
        return tm
    if batch >= 256:
        return 256
    return min(128, _round_up(batch, 8))


def _pick_divisor_tile(total, target=2048):
    """Largest multiple-of-128 divisor of `total` (itself a multiple of 128) <= target."""
    if total <= target:
        return total
    for cand in range(target, 127, -128):
        if total % cand == 0:
            return cand
    return 128


def _tpu_vmem_capacity():
    try:
        info = pltpu.get_tpu_info()
        cap = int(getattr(info, "vmem_capacity_bytes", 0) or 0)
        if cap > 0:
            return cap
    except Exception:
        pass
    return 64 * 1024 * 1024  # conservative (v7x per-TC)


def _vmem_limit(need_bytes):
    cap = _tpu_vmem_capacity()
    ceiling = cap - cap // 8                 # ~12.5% headroom for the compiler
    return int(min(ceiling, max(16 * 1024 * 1024, 2 * need_bytes)))


def _block_spec(shape, index_map, buffer_count=None):
    if buffer_count is None:
        return pl.BlockSpec(shape, index_map)
    return pl.BlockSpec(shape, index_map, pipeline_mode=pl.Buffered(buffer_count))


# ---------------------------------------------------------------------------
# kernels
# ---------------------------------------------------------------------------

def _fused_zeroshot_kernel(img_ref, w_ref, b_ref, txt_ref, out_ref, acc_ref):
    """K-tiled visual projection (bf16 MXU, f32 acc) -> L2 normalize -> logits."""
    k = pl.program_id(1)

    @pl.when(k == 0)
    def _init():
        # Bias folded into the accumulator init (removes it from the finalize path).
        acc_ref[...] = jnp.broadcast_to(b_ref[...], acc_ref.shape)

    acc_ref[...] += jnp.dot(img_ref[...].astype(jnp.bfloat16), w_ref[...],
                            preferred_element_type=jnp.float32)

    @pl.when(k == pl.num_programs(1) - 1)
    def _finalize():
        feat = acc_ref[...]                                     # [TM, D_pad] f32
        # F.normalize(feat, dim=-1): x / max(||x||, 1e-12) done as rsqrt (EUP) + mul.
        # (max(sq, 1e-24) differs only for near-zero rows.)
        sq = jnp.sum(feat * feat, axis=-1, keepdims=True)
        inv = jax.lax.rsqrt(jnp.maximum(sq, 1e-24))
        nfeat = (feat * inv).astype(txt_ref.dtype)              # bf16 into the MXU
        out_ref[...] = jnp.dot(nfeat, txt_ref[...],
                               preferred_element_type=jnp.float32)


def _visual_feature_kernel(img_ref, w_ref, b_ref, nfeat_ref, acc_ref):
    """Split path, stage 1: visual projection + L2 normalize -> bf16 features."""
    k = pl.program_id(1)

    @pl.when(k == 0)
    def _init():
        acc_ref[...] = jnp.broadcast_to(b_ref[...], acc_ref.shape)

    acc_ref[...] += jnp.dot(img_ref[...].astype(jnp.bfloat16), w_ref[...],
                            preferred_element_type=jnp.float32)

    @pl.when(k == pl.num_programs(1) - 1)
    def _finalize():
        feat = acc_ref[...]
        sq = jnp.sum(feat * feat, axis=-1, keepdims=True)
        inv = jax.lax.rsqrt(jnp.maximum(sq, 1e-24))
        nfeat_ref[...] = (feat * inv).astype(nfeat_ref.dtype)


def _logits_kernel(nfeat_ref, txt_ref, out_ref):
    """Split path, stage 2: class-tiled logits matmul."""
    out_ref[...] = jnp.dot(nfeat_ref[...], txt_ref[...],
                           preferred_element_type=jnp.float32)


# ---------------------------------------------------------------------------
# host-side wrappers
# ---------------------------------------------------------------------------

def prepare_zeroshot_params(w_vis, b_vis, txt_feat, *, tk=None):
    """One-time parameter preprocessing (pad / transpose / bf16 cast). Reuse across calls."""
    f_in, d = w_vis.shape
    c_cls = txt_feat.shape[0]

    tk = tk if tk is not None else _pick_tk(f_in)
    f_pad = _round_up(f_in, tk)
    d_pad = _round_up(d, 128)        # lane-dense feature dim
    c_pad = _round_up(c_cls, 128)    # lane-dense output (unmasked vst)

    w_p = jnp.pad(w_vis.astype(jnp.bfloat16), ((0, f_pad - f_in), (0, d_pad - d)))
    b_p = jnp.pad(b_vis.astype(jnp.float32), (0, d_pad - d)).reshape(1, d_pad)
    # Pre-transpose text features once: [D, C] feeds the MXU directly.
    txt_t = jnp.pad(txt_feat.T.astype(jnp.bfloat16),
                    ((0, d_pad - d), (0, c_pad - c_cls)))

    return dict(w_p=w_p, b_p=b_p, txt_t=txt_t,
                F_in=f_in, D=d, C_cls=c_cls,
                TK=tk, F_pad=f_pad, D_pad=d_pad, C_pad=c_pad)


def _fused_call(x_p, p, tm, b_pad, resident_buffers):
    tk, f_pad, d_pad, c_pad = p["TK"], p["F_pad"], p["D_pad"], p["C_pad"]
    grid = (b_pad // tm, f_pad // tk)
    n_btiles = grid[0]
    itemsize = x_p.dtype.itemsize

    w_bytes = f_pad * d_pad * 2
    txt_bytes = d_pad * c_pad * 2
    flops = 2 * b_pad * f_pad * d_pad + 2 * b_pad * d_pad * c_pad
    # Weight is re-streamed once per batch tile; count it honestly.
    bytes_accessed = (b_pad * f_pad * itemsize + n_btiles * w_bytes
                      + txt_bytes + d_pad * 4 + b_pad * c_pad * 4)
    cost = pl.CostEstimate(flops=flops, transcendentals=b_pad,
                           bytes_accessed=bytes_accessed)

    res = resident_buffers if resident_buffers is not None else 2
    vmem_need = (2 * tm * tk * itemsize          # image tiles (double-buffered)
                 + 2 * tk * d_pad * 2            # weight tiles
                 + res * (d_pad * 4 + txt_bytes)  # resident bias + txt^T
                 + 2 * tm * c_pad * 4            # output blocks
                 + tm * d_pad * 4)               # f32 accumulator

    return pl.pallas_call(
        _fused_zeroshot_kernel,
        out_shape=jax.ShapeDtypeStruct((b_pad, c_pad), jnp.float32),
        grid_spec=pltpu.PrefetchScalarGridSpec(
            num_scalar_prefetch=0,
            grid=grid,
            in_specs=[
                pl.BlockSpec((tm, tk), lambda i, k: (i, k)),        # image tile
                pl.BlockSpec((tk, d_pad), lambda i, k: (k, 0)),     # weight tile
                _block_spec((1, d_pad), lambda i, k: (0, 0), resident_buffers),   # bias
                _block_spec((d_pad, c_pad), lambda i, k: (0, 0), resident_buffers),  # txt^T
            ],
            out_specs=pl.BlockSpec((tm, c_pad), lambda i, k: (i, 0)),
            scratch_shapes=[pltpu.VMEM((tm, d_pad), jnp.float32)],
        ),
        compiler_params=pltpu.CompilerParams(
            dimension_semantics=("parallel", "arbitrary"),
            vmem_limit_bytes=_vmem_limit(vmem_need),
        ),
        cost_estimate=cost,
    )(x_p, p["w_p"], p["b_p"], p["txt_t"])


def _visual_features_call(x_p, p, tm, b_pad, resident_buffers):
    tk, f_pad, d_pad = p["TK"], p["F_pad"], p["D_pad"]
    grid = (b_pad // tm, f_pad // tk)
    itemsize = x_p.dtype.itemsize

    w_bytes = f_pad * d_pad * 2
    flops = 2 * b_pad * f_pad * d_pad
    bytes_accessed = (b_pad * f_pad * itemsize + grid[0] * w_bytes
                      + d_pad * 4 + b_pad * d_pad * 2)
    cost = pl.CostEstimate(flops=flops, transcendentals=b_pad,
                           bytes_accessed=bytes_accessed)

    res = resident_buffers if resident_buffers is not None else 2
    vmem_need = (2 * tm * tk * itemsize + 2 * tk * d_pad * 2
                 + res * d_pad * 4 + 2 * tm * d_pad * 2 + tm * d_pad * 4)

    return pl.pallas_call(
        _visual_feature_kernel,
        out_shape=jax.ShapeDtypeStruct((b_pad, d_pad), jnp.bfloat16),
        grid_spec=pltpu.PrefetchScalarGridSpec(
            num_scalar_prefetch=0,
            grid=grid,
            in_specs=[
                pl.BlockSpec((tm, tk), lambda i, k: (i, k)),
                pl.BlockSpec((tk, d_pad), lambda i, k: (k, 0)),
                _block_spec((1, d_pad), lambda i, k: (0, 0), resident_buffers),
            ],
            out_specs=pl.BlockSpec((tm, d_pad), lambda i, k: (i, 0)),
            scratch_shapes=[pltpu.VMEM((tm, d_pad), jnp.float32)],
        ),
        compiler_params=pltpu.CompilerParams(
            dimension_semantics=("parallel", "arbitrary"),
            vmem_limit_bytes=_vmem_limit(vmem_need),
        ),
        cost_estimate=cost,
    )(x_p, p["w_p"], p["b_p"])


def _logits_call(nfeat, p, tm, b_pad, tc=None):
    d_pad, c_pad = p["D_pad"], p["C_pad"]
    tc = tc if tc is not None else _pick_divisor_tile(c_pad, 2048)
    grid = (b_pad // tm, c_pad // tc)

    flops = 2 * b_pad * d_pad * c_pad
    bytes_accessed = b_pad * d_pad * 2 + d_pad * c_pad * 2 + b_pad * c_pad * 4
    cost = pl.CostEstimate(flops=flops, transcendentals=0,
                           bytes_accessed=bytes_accessed)
    vmem_need = 2 * (tm * d_pad * 2 + d_pad * tc * 2 + tm * tc * 4)

    return pl.pallas_call(
        _logits_kernel,
        out_shape=jax.ShapeDtypeStruct((b_pad, c_pad), jnp.float32),
        grid_spec=pltpu.PrefetchScalarGridSpec(
            num_scalar_prefetch=0,
            grid=grid,
            in_specs=[
                pl.BlockSpec((tm, d_pad), lambda i, j: (i, 0)),   # normalized features
                pl.BlockSpec((d_pad, tc), lambda i, j: (0, j)),   # txt^T class tile
            ],
            out_specs=pl.BlockSpec((tm, tc), lambda i, j: (i, j)),
        ),
        compiler_params=pltpu.CompilerParams(
            dimension_semantics=("parallel", "parallel"),
            vmem_limit_bytes=_vmem_limit(vmem_need),
        ),
        cost_estimate=cost,
    )(nfeat, p["txt_t"])


def zeroshot_forward(img_nchw, params, *, tm=None, force_split=None):
    """img_nchw: [B, C, H, W]; params: output of prepare_zeroshot_params.

    Returns logits [B, num_classes] in float32.
    """
    b = img_nchw.shape[0]
    f_in, f_pad = params["F_in"], params["F_pad"]
    d_pad, c_pad, c_cls = params["D_pad"], params["C_pad"], params["C_cls"]

    tm = _pick_tm(b, tm)
    b_pad = _round_up(b, tm)

    x = img_nchw.reshape(b, -1)                  # glue: flatten NCHW -> [B, C*H*W]
    assert x.shape[1] == f_in, "image size inconsistent with prepared params"
    if x.dtype not in (jnp.float32, jnp.bfloat16):
        x = x.astype(jnp.float32)
    pad_b, pad_f = b_pad - b, f_pad - f_in
    if pad_b or pad_f:                           # usually pad_f == 0 (TK divides F_in)
        x = jnp.pad(x, ((0, pad_b), (0, pad_f)))

    # Class-tiled split path when the resident txt^T block would stress VMEM
    # (large label sets); fused single-kernel path otherwise.
    txt_bytes = d_pad * c_pad * 2
    use_split = force_split if force_split is not None else (txt_bytes > (8 << 20))

    def _run(resident_buffers):
        if use_split:
            nfeat = _visual_features_call(x, params, tm, b_pad, resident_buffers)
            return _logits_call(nfeat, params, tm, b_pad)
        return _fused_call(x, params, tm, b_pad, resident_buffers)

    try:
        # Single-buffer the constant-index resident blocks (bias, txt^T): their
        # index_map never changes, so default double-buffering only wastes VMEM.
        out = _run(1)
    except Exception:
        # Fallback if pipeline_mode=pl.Buffered is unsupported on this build.
        out = _run(None)

    return out[:b, :c_cls]


def build_text_features(key, num_classes, num_templates, dim):
    """Deterministic stand-in for the precomputed normalized text features.

    Mirrors __init__: per-template embeddings are L2-normalized, averaged over
    templates, then re-normalized.  (The text encoder itself is synthetic.)
    """
    emb = jax.random.normal(key, (num_classes, num_templates, dim), jnp.float32)
    emb = emb / jnp.linalg.norm(emb, axis=-1, keepdims=True)
    cls = emb.mean(axis=1)
    cls = cls / jnp.linalg.norm(cls, axis=-1, keepdims=True)
    return cls                                    # [num_classes, dim]


if __name__ == "__main__":
    # Small shapes consistent with the forward pass.
    B, C, H, W = 2, 4, 16, 16     # image: NCHW
    D = 32                        # embedding dim
    NUM_CLASSES = 8
    NUM_TEMPLATES = 7

    key = jax.random.PRNGKey(0)
    k_img, k_w, k_b, k_txt = jax.random.split(key, 4)

    img = jax.random.normal(k_img, (B, C, H, W), jnp.float32)
    w_vis = 0.02 * jax.random.normal(k_w, (C * H * W, D), jnp.float32)
    b_vis = 0.01 * jax.random.normal(k_b, (D,), jnp.float32)
    txt_feat = build_text_features(k_txt, NUM_CLASSES, NUM_TEMPLATES, D)

    # Parameter preprocessing hoisted out of the per-call path: done exactly once.
    params = prepare_zeroshot_params(w_vis, b_vis, txt_feat)

    logits = zeroshot_forward(img, params)                          # fused path
    jax.block_until_ready(logits)
    logits_split = zeroshot_forward(img, params, force_split=True)  # class-tiled path
    jax.block_until_ready(logits_split)

    # Pure-JAX reference (same bf16 MXU-operand quantization as the kernel, f32 math).
    x32 = img.reshape(B, -1).astype(jnp.bfloat16).astype(jnp.float32)
    w32 = w_vis.astype(jnp.bfloat16).astype(jnp.float32)
    txt32 = txt_feat.astype(jnp.bfloat16).astype(jnp.float32)
    feat_ref = x32 @ w32 + b_vis
    nfeat_ref = feat_ref / jnp.maximum(
        jnp.linalg.norm(feat_ref, axis=-1, keepdims=True), 1e-12)
    logits_ref = nfeat_ref @ txt32.T

    assert logits.shape == (B, NUM_CLASSES)
    assert jnp.allclose(logits, logits_ref, atol=1e-2, rtol=1e-2), "fused mismatch"
    assert jnp.allclose(logits_split, logits_ref, atol=1e-2, rtol=1e-2), "split mismatch"

    print("KERNEL_OK")
</pallas_src>

<mosaic_0001>
module attributes {stable_mosaic.version = 11 : i64} {
  func.func @_fused_zeroshot_kernel(%arg0: i32, %arg1: i32, %arg2: memref<8x1024xf32, #tpu.memory_space<vmem>>, %arg3: memref<1024x128xbf16, #tpu.memory_space<vmem>>, %arg4: memref<1x128xf32, #tpu.memory_space<vmem>>, %arg5: memref<128x128xbf16, #tpu.memory_space<vmem>>, %arg6: memref<8x128xf32, #tpu.memory_space<vmem>>, %arg7: memref<8x128xf32, #tpu.memory_space<vmem>>) attributes {dimension_semantics = [#tpu.dimension_semantics<parallel>, #tpu.dimension_semantics<arbitrary>], iteration_bounds = array<i64: 1, 1>, scalar_prefetch = 0 : i64, scratch_operands = 1 : i64, tpu.core_type = #tpu.core_type<tc>, window_params = [{transform_indices = @transform_0, window_bounds = array<i64: 8, 1024>}, {transform_indices = @transform_1, window_bounds = array<i64: 1024, 128>}, {pipeline_mode = #tpu.pipeline_mode<synchronous>, transform_indices = @transform_2, window_bounds = array<i64: 1, 128>}, {pipeline_mode = #tpu.pipeline_mode<synchronous>, transform_indices = @transform_3, window_bounds = array<i64: 128, 128>}, {transform_indices = @transform_4, window_bounds = array<i64: 8, 128>}]} {
    %c0_i32 = arith.constant 0 : i32
    %0 = arith.cmpi eq, %arg1, %c0_i32 : i32
    %1 = arith.extui %0 : i1 to i32
    %c0_i32_0 = arith.constant 0 : i32
    %2 = arith.cmpi ne, %1, %c0_i32_0 : i32
    scf.if %2 {
      %c0_10 = arith.constant 0 : index
      %c0_11 = arith.constant 0 : index
      %13 = vector.load %arg4[%c0_10, %c0_11] : memref<1x128xf32, #tpu.memory_space<vmem>>, vector<1x128xf32>
      %14 = vector.shape_cast %13 : vector<1x128xf32> to vector<1x128xf32>
      %15 = vector.broadcast %14 : vector<1x128xf32> to vector<8x128xf32>
      %c0_12 = arith.constant 0 : index
      %c0_13 = arith.constant 0 : index
      %16 = vector.load %arg7[%c0_12, %c0_13] : memref<8x128xf32, #tpu.memory_space<vmem>>, vector<8x128xf32>
      tpu.vector_store %arg7[%c0_12, %c0_13], %15 {strides = array<i32>} : memref<8x128xf32, #tpu.memory_space<vmem>>, vector<8x128xf32>,
    } else {
    }
    %c0 = arith.constant 0 : index
    %c0_1 = arith.constant 0 : index
    %3 = vector.load %arg7[%c0, %c0_1] : memref<8x128xf32, #tpu.memory_space<vmem>>, vector<8x128xf32>
    %c0_2 = arith.constant 0 : index
    %c0_3 = arith.constant 0 : index
    %4 = vector.load %arg2[%c0_2, %c0_3] : memref<8x1024xf32, #tpu.memory_space<vmem>>, vector<8x1024xf32>
    %5 = arith.truncf %4 : vector<8x1024xf32> to vector<8x1024xbf16>
    %c0_4 = arith.constant 0 : index
    %c0_5 = arith.constant 0 : index
    %6 = vector.load %arg3[%c0_4, %c0_5] : memref<1024x128xbf16, #tpu.memory_space<vmem>>, vector<1024x128xbf16>
    %cst = arith.constant dense<0.000000e+00> : vector<8x128xf32>
    %7 = tpu.matmul %5, %6, %cst {dimension_numbers = #tpu.dot_dimension_numbers<[1], [0], [0], [1], [0, 0, 1, 1], [], []>} : vector<8x1024xbf16>, vector<1024x128xbf16>, vector<8x128xf32> -> vector<8x128xf32>
    %8 = arith.addf %3, %7 : vector<8x128xf32>
    %c0_6 = arith.constant 0 : index
    %c0_7 = arith.constant 0 : index
    %9 = vector.load %arg7[%c0_6, %c0_7] : memref<8x128xf32, #tpu.memory_space<vmem>>, vector<8x128xf32>
    tpu.vector_store %arg7[%c0_6, %c0_7], %8 {strides = array<i32>} : memref<8x128xf32, #tpu.memory_space<vmem>>, vector<8x128xf32>,
    %c0_i32_8 = arith.constant 0 : i32
    %10 = arith.cmpi eq, %arg1, %c0_i32_8 : i32
    %11 = arith.extui %10 : i1 to i32
    %c0_i32_9 = arith.constant 0 : i32
    %12 = arith.cmpi ne, %11, %c0_i32_9 : i32
    scf.if %12 {
      %c0_10 = arith.constant 0 : index
      %c0_11 = arith.constant 0 : index
      %13 = vector.load %arg7[%c0_10, %c0_11] : memref<8x128xf32, #tpu.memory_space<vmem>>, vector<8x128xf32>
      %14 = arith.mulf %13, %13 : vector<8x128xf32>
      %cst_12 = arith.constant dense<0.000000e+00> : vector<8xf32>
      %15 = vector.multi_reduction <add>, %14, %cst_12 [1] : vector<8x128xf32> to vector<8xf32>
      %16 = vector.shape_cast %15 : vector<8xf32> to vector<8x1xf32>
      %cst_13 = arith.constant 1.000000e-24 : f32
      %17 = vector.broadcast %cst_13 : f32 to vector<8x1xf32>
      %18 = arith.maximumf %16, %17 : vector<8x1xf32>
      %19 = math.rsqrt %18 : vector<8x1xf32>
      %20 = vector.broadcast %19 : vector<8x1xf32> to vector<8x128xf32>
      %21 = arith.mulf %13, %20 : vector<8x128xf32>
      %22 = arith.truncf %21 : vector<8x128xf32> to vector<8x128xbf16>
      %c0_14 = arith.constant 0 : index
      %c0_15 = arith.constant 0 : index
      %23 = vector.load %arg5[%c0_14, %c0_15] : memref<128x128xbf16, #tpu.memory_space<vmem>>, vector<128x128xbf16>
      %cst_16 = arith.constant dense<0.000000e+00> : vector<8x128xf32>
      %24 = tpu.matmul %22, %23, %cst_16 {dimension_numbers = #tpu.dot_dimension_numbers<[1], [0], [0], [1], [0, 0, 1, 1], [], []>} : vector<8x128xbf16>, vector<128x128xbf16>, vector<8x128xf32> -> vector<8x128xf32>
      %c0_17 = arith.constant 0 : index
      %c0_18 = arith.constant 0 : index
      %25 = vector.load %arg6[%c0_17, %c0_18] : memref<8x128xf32, #tpu.memory_space<vmem>>, vector<8x128xf32>
      tpu.vector_store %arg6[%c0_17, %c0_18], %24 {strides = array<i32>} : memref<8x128xf32, #tpu.memory_space<vmem>>, vector<8x128xf32>,
    } else {
    }
    return
  }
  func.func @transform_0(%arg0: i32, %arg1: i32) -> (i32, i32) {
    %c0_i32 = arith.constant 0 : i32
    return %arg0, %arg1 : i32, i32
  }
  func.func @transform_1(%arg0: i32, %arg1: i32) -> (i32, i32) {
    %c0_i32 = arith.constant 0 : i32
    %c0_i32_0 = arith.constant 0 : i32
    return %arg1, %c0_i32 : i32, i32
  }
  func.func @transform_2(%arg0: i32, %arg1: i32) -> (i32, i32) {
    %c0_i32 = arith.constant 0 : i32
    %c0_i32_0 = arith.constant 0 : i32
    %c0_i32_1 = arith.constant 0 : i32
    return %c0_i32, %c0_i32_0 : i32, i32
  }
  func.func @transform_3(%arg0: i32, %arg1: i32) -> (i32, i32) {
    %c0_i32 = arith.constant 0 : i32
    %c0_i32_0 = arith.constant 0 : i32
    %c0_i32_1 = arith.constant 0 : i32
    return %c0_i32, %c0_i32_0 : i32, i32
  }
  func.func @transform_4(%arg0: i32, %arg1: i32) -> (i32, i32) {
    %c0_i32 = arith.constant 0 : i32
    %c0_i32_0 = arith.constant 0 : i32
    return %arg0, %c0_i32 : i32, i32
  }
}

module attributes {stable_mosaic.version = 11 : i64} {
  func.func @_fused_zeroshot_kernel(%arg0: i32, %arg1: i32, %arg2: memref<8x1024xf32, #tpu.memory_space<vmem>>, %arg3: memref<1024x128xbf16, #tpu.memory_space<vmem>>, %arg4: memref<1x128xf32, #tpu.memory_space<vmem>>, %arg5: memref<128x128xbf16, #tpu.memory_space<vmem>>, %arg6: memref<8x128xf32, #tpu.memory_space<vmem>>, %arg7: memref<8x128xf32, #tpu.memory_space<vmem>>) attributes {dimension_semantics = [#tpu.dimension_semantics<parallel>, #tpu.dimension_semantics<arbitrary>], iteration_bounds = array<i64: 1, 1>, scalar_prefetch = 0 : i64, scratch_operands = 1 : i64, tpu.core_type = #tpu.core_type<tc>, window_params = [{transform_indices = @transform_0, window_bounds = array<i64: 8, 1024>}, {transform_indices = @transform_1, window_bounds = array<i64: 1024, 128>}, {pipeline_mode = #tpu.pipeline_mode<synchronous>, transform_indices = @transform_2, window_bounds = array<i64: 1, 128>}, {pipeline_mode = #tpu.pipeline_mode<synchronous>, transform_indices = @transform_3, window_bounds = array<i64: 128, 128>}, {transform_indices = @transform_4, window_bounds = array<i64: 8, 128>}]} {
    %c0_i32 = arith.constant 0 : i32
    %0 = arith.cmpi eq, %arg1, %c0_i32 : i32
    %1 = arith.extui %0 : i1 to i32
    %c0_i32_0 = arith.constant 0 : i32
    %2 = arith.cmpi ne, %1, %c0_i32_0 : i32
    scf.if %2 {
      %c0_10 = arith.constant 0 : index
      %c0_11 = arith.constant 0 : index
      %13 = vector.load %arg4[%c0_10, %c0_11] : memref<1x128xf32, #tpu.memory_space<vmem>>, vector<1x128xf32>
      %14 = vector.shape_cast %13 : vector<1x128xf32> to vector<1x128xf32>
      %15 = vector.broadcast %14 : vector<1x128xf32> to vector<8x128xf32>
      %c0_12 = arith.constant 0 : index
      %c0_13 = arith.constant 0 : index
      %16 = vector.load %arg7[%c0_12, %c0_13] : memref<8x128xf32, #tpu.memory_space<vmem>>, vector<8x128xf32>
      tpu.vector_store %arg7[%c0_12, %c0_13], %15 {strides = array<i32>} : memref<8x128xf32, #tpu.memory_space<vmem>>, vector<8x128xf32>,
    } else {
    }
    %c0 = arith.constant 0 : index
    %c0_1 = arith.constant 0 : index
    %3 = vector.load %arg7[%c0, %c0_1] : memref<8x128xf32, #tpu.memory_space<vmem>>, vector<8x128xf32>
    %c0_2 = arith.constant 0 : index
    %c0_3 = arith.constant 0 : index
    %4 = vector.load %arg2[%c0_2, %c0_3] : memref<8x1024xf32, #tpu.memory_space<vmem>>, vector<8x1024xf32>
    %5 = arith.truncf %4 : vector<8x1024xf32> to vector<8x1024xbf16>
    %c0_4 = arith.constant 0 : index
    %c0_5 = arith.constant 0 : index
    %6 = vector.load %arg3[%c0_4, %c0_5] : memref<1024x128xbf16, #tpu.memory_space<vmem>>, vector<1024x128xbf16>
    %cst = arith.constant dense<0.000000e+00> : vector<8x128xf32>
    %7 = tpu.matmul %5, %6, %cst {dimension_numbers = #tpu.dot_dimension_numbers<[1], [0], [0], [1], [0, 0, 1, 1], [], []>} : vector<8x1024xbf16>, vector<1024x128xbf16>, vector<8x128xf32> -> vector<8x128xf32>
    %8 = arith.addf %3, %7 : vector<8x128xf32>
    %c0_6 = arith.constant 0 : index
    %c0_7 = arith.constant 0 : index
    %9 = vector.load %arg7[%c0_6, %c0_7] : memref<8x128xf32, #tpu.memory_space<vmem>>, vector<8x128xf32>
    tpu.vector_store %arg7[%c0_6, %c0_7], %8 {strides = array<i32>} : memref<8x128xf32, #tpu.memory_space<vmem>>, vector<8x128xf32>,
    %c0_i32_8 = arith.constant 0 : i32
    %10 = arith.cmpi eq, %arg1, %c0_i32_8 : i32
    %11 = arith.extui %10 : i1 to i32
    %c0_i32_9 = arith.constant 0 : i32
    %12 = arith.cmpi ne, %11, %c0_i32_9 : i32
    scf.if %12 {
      %c0_10 = arith.constant 0 : index
      %c0_11 = arith.constant 0 : index
      %13 = vector.load %arg7[%c0_10, %c0_11] : memref<8x128xf32, #tpu.memory_space<vmem>>, vector<8x128xf32>
      %14 = arith.mulf %13, %13 : vector<8x128xf32>
      %cst_12 = arith.constant dense<0.000000e+00> : vector<8xf32>
      %15 = vector.multi_reduction <add>, %14, %cst_12 [1] : vector<8x128xf32> to vector<8xf32>
      %16 = vector.shape_cast %15 : vector<8xf32> to vector<8x1xf32>
      %cst_13 = arith.constant 1.000000e-24 : f32
      %17 = vector.broadcast %cst_13 : f32 to vector<8x1xf32>
      %18 = arith.maximumf %16, %17 : vector<8x1xf32>
      %19 = math.rsqrt %18 : vector<8x1xf32>
      %20 = vector.broadcast %19 : vector<8x1xf32> to vector<8x128xf32>
      %21 = arith.mulf %13, %20 : vector<8x128xf32>
      %22 = arith.truncf %21 : vector<8x128xf32> to vector<8x128xbf16>
      %c0_14 = arith.constant 0 : index
      %c0_15 = arith.constant 0 : index
      %23 = vector.load %arg5[%c0_14, %c0_15] : memref<128x128xbf16, #tpu.memory_space<vmem>>, vector<128x128xbf16>
      %cst_16 = arith.constant dense<0.000000e+00> : vector<8x128xf32>
      %24 = tpu.matmul %22, %23, %cst_16 {dimension_numbers = #tpu.dot_dimension_numbers<[1], [0], [0], [1], [0, 0, 1, 1], [], []>} : vector<8x128xbf16>, vector<128x128xbf16>, vector<8x128xf32> -> vector<8x128xf32>
      %c0_17 = arith.constant 0 : index
      %c0_18 = arith.constant 0 : index
      %25 = vector.load %arg6[%c0_17, %c0_18] : memref<8x128xf32, #tpu.memory_space<vmem>>, vector<8x128xf32>
      tpu.vector_store %arg6[%c0_17, %c0_18], %24 {strides = array<i32>} : memref<8x128xf32, #tpu.memory_space<vmem>>, vector<8x128xf32>,
    } else {
    }
    return
  }
  func.func @transform_0(%arg0: i32, %arg1: i32) -> (i32, i32) {
    %c0_i32 = arith.constant 0 : i32
    return %arg0, %arg1 : i32, i32
  }
  func.func @transform_1(%arg0: i32, %arg1: i32) -> (i32, i32) {
    %c0_i32 = arith.constant 0 : i32
    %c0_i32_0 = arith.constant 0 : i32
    return %arg1, %c0_i32 : i32, i32
  }
  func.func @transform_2(%arg0: i32, %arg1: i32) -> (i32, i32) {
    %c0_i32 = arith.constant 0 : i32
    %c0_i32_0 = arith.constant 0 : i32
    %c0_i32_1 = arith.constant 0 : i32
    return %c0_i32, %c0_i32_0 : i32, i32
  }
  func.func @transform_3(%arg0: i32, %arg1: i32) -> (i32, i32) {
    %c0_i32 = arith.constant 0 : i32
    %c0_i32_0 = arith.constant 0 : i32
    %c0_i32_1 = arith.constant 0 : i32
    return %c0_i32, %c0_i32_0 : i32, i32
  }
  func.func @transform_4(%arg0: i32, %arg1: i32) -> (i32, i32) {
    %c0_i32 = arith.constant 0 : i32
    %c0_i32_0 = arith.constant 0 : i32
    return %arg0, %c0_i32 : i32, i32
  }
}

</mosaic_0001>

<llo_original>
// kernel: tpu_custom_call.1
$region0: #{tpu_custom_call.1}
  #allocation0 [shape = 'u32[]', space=smem, size = 0x4, offset = 0x4, fixed_abs, tag = 'smem constant byte address 0x4 - core index']
  #allocation1 [shape = 'u32[144,128]{1,0:T(1,128)}', space=vmem, size = 0x12000, scoped, tag = 'internal scratch']
  #allocation2 [shape = 'f32[8,128]{1,0:T(8,128)}', space=vmem, size = 0x1000, scoped, tag = 'scratch operand']
  %s0 = inlined_call_operand.hbm [shape: f32[8,1024], index: 0, kind: input, shape index: {}]
  %s1 = inlined_call_operand.hbm [shape: bf16[1024,128], index: 1, kind: input, shape index: {}]
  %s2 = inlined_call_operand.vmem [shape: f32[1,128], index: 2, kind: input, shape index: {}]
  %s3 = inlined_call_operand.hbm [shape: bf16[128,128], index: 3, kind: input, shape index: {}]
  %s4 = inlined_call_operand.hbm [shape: f32[8,128], index: 4, kind: output, shape index: {}]
  %s5 = sld [smem:[#allocation0]]
  $region46: #{tpu_custom_call.1} parent=0
    _
  %s7 = ssub.s32 1, %s5
  %s8 = scalar_select 0, %s7, %s5
  $region1: #{tpu_custom_call.1} parent=0
    #allocation3 [shape = 'u8[32768]{0}', space=vmem, size = 0x8000, scoped, tag = 'input window, operand 0, single buffered']
    #allocation4 [shape = 's32[1]{0}', space=sflag, size = 0x4, scoped, tag = 'scoped memory for tpu_custom_call.1']
    #allocation5 [shape = 's32[1]{0}', space=sflag, size = 0x4, scoped, tag = 'scoped memory for tpu_custom_call.1']
    #allocation6 [shape = 'u8[262144]{0}', space=vmem, size = 0x40000, scoped, tag = 'input window, operand 1, single buffered']
    #allocation7 [shape = 's32[1]{0}', space=sflag, size = 0x4, scoped, tag = 'scoped memory for tpu_custom_call.1']
    #allocation8 [shape = 'u8[32768]{0}', space=vmem, size = 0x8000, scoped, tag = 'input window, operand 3, single buffered']
    #allocation9 [shape = 'u8[4096]{0}', space=vmem, size = 0x1000, scoped, tag = 'output window, operand 0, single buffered']
    %9 = vsyncpa [#allocation4], 0
    %10 = vsyncpa [#allocation7], 0
    %11 = vsyncpa [#allocation5], 0
    // Predicated region
    $region2: #{tpu_custom_call.1} parent=1 // pred_check
      _
    $region3: #{tpu_custom_call.1} parent=1 // pred_check_branch
      %13 = sbr.rel (0) target = $region5
    $region4: #{tpu_custom_call.1} parent=1 // pred_region
      %s15 = ssub.s32 1024, 1024
      %16 = vsyncadd [#allocation4], %s15
      %s18 = sshll.u32 [#allocation3], 4
      %s19 = int_to_ptr.vmem [resolvable:$true] %s18
      %21 = dma.hbm_to_vmem [thread:$0]  %s0, 1024, %s19, [#allocation4]
    $region5: #{tpu_custom_call.1} parent=1 // pred_fallthru
      _
    // Predicated region
    $region6: #{tpu_custom_call.1} parent=1 // pred_check
      _
    $region7: #{tpu_custom_call.1} parent=1 // pred_check_branch
      %23 = sbr.rel (0) target = $region9
    $region8: #{tpu_custom_call.1} parent=1 // pred_region
      %s25 = ssub.s32 8192, 8192
      %26 = vsyncadd [#allocation7], %s25
      %s27 = sshll.u32 [#allocation6], 4
      %s28 = int_to_ptr.vmem [resolvable:$true] %s27
      %33 = dma.hbm_to_vmem [thread:$0]  %s1, 8192, %s28, [#allocation7], 64, 64, 4
    $region9: #{tpu_custom_call.1} parent=1 // pred_fallthru
      _
    // Predicated region
    $region10: #{tpu_custom_call.1} parent=1 // pred_check
      _
    $region11: #{tpu_custom_call.1} parent=1 // pred_check_branch
      %35 = sbr.rel (0) target = $region13
    $region12: #{tpu_custom_call.1} parent=1 // pred_region
      _
    $region13: #{tpu_custom_call.1} parent=1 // pred_fallthru
      _
    // Predicated region
    $region14: #{tpu_custom_call.1} parent=1 // pred_check
      _
    $region15: #{tpu_custom_call.1} parent=1 // pred_check_branch
      %37 = sbr.rel (0) target = $region17
    $region16: #{tpu_custom_call.1} parent=1 // pred_region
      %s39 = ssub.s32 1024, 1024
      %40 = vsyncadd [#allocation7], %s39
      %s41 = sshll.u32 [#allocation8], 4
      %s42 = int_to_ptr.vmem [resolvable:$true] %s41
      %47 = dma.hbm_to_vmem [thread:$0]  %s3, 1024, %s42, [#allocation7], 64, 64, 4
    $region17: #{tpu_custom_call.1} parent=1 // pred_fallthru
      _
    // Predicated region
    $region18: #{tpu_custom_call.1} parent=1 // pred_check
      _
    $region19: #{tpu_custom_call.1} parent=1 // pred_check_branch
      %49 = sbr.rel (0) target = $region21
    $region20: #{tpu_custom_call.1} parent=1 // pred_region
      %50 = dma.done [#allocation4], 1024
    $region21: #{tpu_custom_call.1} parent=1 // pred_fallthru
      _
    // Predicated region
    $region22: #{tpu_custom_call.1} parent=1 // pred_check
      _
    $region23: #{tpu_custom_call.1} parent=1 // pred_check_branch
      %52 = sbr.rel (0) target = $region25
    $region24: #{tpu_custom_call.1} parent=1 // pred_region
      %53 = dma.done [#allocation7], 8192
    $region25: #{tpu_custom_call.1} parent=1 // pred_fallthru
      _
    // Predicated region
    $region26: #{tpu_custom_call.1} parent=1 // pred_check
      _
    $region27: #{tpu_custom_call.1} parent=1 // pred_check_branch
      %55 = sbr.rel (0) target = $region29
    $region28: #{tpu_custom_call.1} parent=1 // pred_region
      %56 = dma.done [#allocation7], 1024
    $region29: #{tpu_custom_call.1} parent=1 // pred_fallthru
      _
    %p58 = scmp.eq.s32.totalorder 0, 0
    // Predicated region
    $region30: #{tpu_custom_call.1} parent=1 // pred_check
      %p59 = pneg %p58
    $region31: #{tpu_custom_call.1} parent=1 // pred_check_branch
      %61 = sbr.rel (%p59) target = $region33
    $region32: #{tpu_custom_call.1} parent=1 // pred_region
      %v62 = vld [vmem:[%s2] sm:$0x1]
      %v64 = vlaneseq
      %v65 = vshrl.u32 %v64, 7
      %v66 = vsub.s32 0, %v65
      %v67 = vrot.slane %v62, %v66
      %69 = vst [vmem:[#allocation2] sm:$0xff] %v67
    $region33: #{tpu_custom_call.1} parent=1 // pred_fallthru
      _
    %v70 = vld [vmem:[#allocation2] sm:$0xff]
    %v71 = vld [vmem:[#allocation3] sm:$0xff]
    %v72 = vld [vmem:[#allocation3 + $0x8] sm:$0xff]
    %v73 = vld [vmem:[#allocation3 + $0x10] sm:$0xff]
    %v74 = vld [vmem:[#allocation3 + $0x18] sm:$0xff]
    %v75 = vld [vmem:[#allocation3 + $0x20] sm:$0xff]
    %v76 = vld [vmem:[#allocation3 + $0x28] sm:$0xff]
    %v77 = vld [vmem:[#allocation3 + $0x30] sm:$0xff]
    %v78 = vld [vmem:[#allocation3 + $0x38] sm:$0xff]
    %v79 = vpack.c.bf16 %v71, %v71
    %v80 = vpack.c.bf16 %v72, %v72
    %v81 = vpack.c.bf16 %v73, %v73
    %v82 = vpack.c.bf16 %v74, %v74
    %v83 = vpack.c.bf16 %v75, %v75
    %v84 = vpack.c.bf16 %v76, %v76
    %v85 = vpack.c.bf16 %v77, %v77
    %v86 = vpack.c.bf16 %v78, %v78
    %v87 = vld [vmem:[#allocation6] sm:$0xf]
    %v88 = vld [vmem:[#allocation6 + $0x4] sm:$0xf]
    %v89 = vld [vmem:[#allocation6 + $0x8] sm:$0xf]
    %v90 = vld [vmem:[#allocation6 + $0xc] sm:$0xf]
    %v91 = vld [vmem:[#allocation6 + $0x10] sm:$0xf]
    %v92 = vld [vmem:[#allocation6 + $0x14] sm:$0xf]
    %v93 = vld [vmem:[#allocation6 + $0x18] sm:$0xf]
    %v94 = vld [vmem:[#allocation6 + $0x1c] sm:$0xf]
    %v95 = vld [vmem:[#allocation6 + $0x20] sm:$0xf]
    %v96 = vld [vmem:[#allocation6 + $0x24] sm:$0xf]
    %v97 = vld [vmem:[#allocation6 + $0x28] sm:$0xf]
    %v98 = vld [vmem:[#allocation6 + $0x2c] sm:$0xf]
    %v99 = vld [vmem:[#allocation6 + $0x30] sm:$0xf]
    %v100 = vld [vmem:[#allocation6 + $0x34] sm:$0xf]
    %v101 = vld [vmem:[#allocation6 + $0x38] sm:$0xf]
    %v102 = vld [vmem:[#allocation6 + $0x3c] sm:$0xf]
    %v103 = vld [vmem:[#allocation6 + $0x40] sm:$0xf]
    %v104 = vld [vmem:[#allocation6 + $0x44] sm:$0xf]
    %v105 = vld [vmem:[#allocation6 + $0x48] sm:$0xf]
    %v106 = vld [vmem:[#allocation6 + $0x4c] sm:$0xf]
    %v107 = vld [vmem:[#allocation6 + $0x50] sm:$0xf]
    %v108 = vld [vmem:[#allocation6 + $0x54] sm:$0xf]
    %v109 = vld [vmem:[#allocation6 + $0x58] sm:$0xf]
    %v110 = vld [vmem:[#allocation6 + $0x5c] sm:$0xf]
    %v111 = vld [vmem:[#allocation6 + $0x60] sm:$0xf]
    %v112 = vld [vmem:[#allocation6 + $0x64] sm:$0xf]
    %v113 = vld [vmem:[#allocation6 + $0x68] sm:$0xf]
    %v114 = vld [vmem:[#allocation6 + $0x6c] sm:$0xf]
    %v115 = vld [vmem:[#allocation6 + $0x70] sm:$0xf]
    %v116 = vld [vmem:[#allocation6 + $0x74] sm:$0xf]
    %v117 = vld [vmem:[#allocation6 + $0x78] sm:$0xf]
    %v118 = vld [vmem:[#allocation6 + $0x7c] sm:$0xf]
    %v119 = vld [vmem:[#allocation6 + $0x80] sm:$0xf]
    %v120 = vld [vmem:[#allocation6 + $0x84] sm:$0xf]
    %v121 = vld [vmem:[#allocation6 + $0x88] sm:$0xf]
    %v122 = vld [vmem:[#allocation6 + $0x8c] sm:$0xf]
    %v123 = vld [vmem:[#allocation6 + $0x90] sm:$0xf]
    %v124 = vld [vmem:[#allocation6 + $0x94] sm:$0xf]
    %v125 = vld [vmem:[#allocation6 + $0x98] sm:$0xf]
    %v126 = vld [vmem:[#allocation6 + $0x9c] sm:$0xf]
    %v127 = vld [vmem:[#allocation6 + $0xa0] sm:$0xf]
    %v128 = vld [vmem:[#allocation6 + $0xa4] sm:$0xf]
    %v129 = vld [vmem:[#allocation6 + $0xa8] sm:$0xf]
    %v130 = vld [vmem:[#allocation6 + $0xac] sm:$0xf]
    %v131 = vld [vmem:[#allocation6 + $0xb0] sm:$0xf]
    %v132 = vld [vmem:[#allocation6 + $0xb4] sm:$0xf]
    %v133 = vld [vmem:[#allocation6 + $0xb8] sm:$0xf]
    %v134 = vld [vmem:[#allocation6 + $0xbc] sm:$0xf]
    %v135 = vld [vmem:[#allocation6 + $0xc0] sm:$0xf]
    %v136 = vld [vmem:[#allocation6 + $0xc4] sm:$0xf]
    %v137 = vld [vmem:[#allocation6 + $0xc8] sm:$0xf]
    %v138 = vld [vmem:[#allocation6 + $0xcc] sm:$0xf]
    %v139 = vld [vmem:[#allocation6 + $0xd0] sm:$0xf]
    %v140 = vld [vmem:[#allocation6 + $0xd4] sm:$0xf]
    %v141 = vld [vmem:[#allocation6 + $0xd8] sm:$0xf]
    %v142 = vld [vmem:[#allocation6 + $0xdc] sm:$0xf]
    %v143 = vld [vmem:[#allocation6 + $0xe0] sm:$0xf]
    %v144 = vld [vmem:[#allocation6 + $0xe4] sm:$0xf]
    %v145 = vld [vmem:[#allocation6 + $0xe8] sm:$0xf]
    %v146 = vld [vmem:[#allocation6 + $0xec] sm:$0xf]
    %v147 = vld [vmem:[#allocation6 + $0xf0] sm:$0xf]
    %v148 = vld [vmem:[#allocation6 + $0xf4] sm:$0xf]
    %v149 = vld [vmem:[#allocation6 + $0xf8] sm:$0xf]
    %v150 = vld [vmem:[#allocation6 + $0xfc] sm:$0xf]
    %v151 = vld [vmem:[#allocation6 + $0x100] sm:$0xf]
    %v152 = vld [vmem:[#allocation6 + $0x104] sm:$0xf]
    %v153 = vld [vmem:[#allocation6 + $0x108] sm:$0xf]
    %v154 = vld [vmem:[#allocation6 + $0x10c] sm:$0xf]
    %v155 = vld [vmem:[#allocation6 + $0x110] sm:$0xf]
    %v156 = vld [vmem:[#allocation6 + $0x114] sm:$0xf]
    %v157 = vld [vmem:[#allocation6 + $0x118] sm:$0xf]
    %v158 = vld [vmem:[#allocation6 + $0x11c] sm:$0xf]
    %v159 = vld [vmem:[#allocation6 + $0x120] sm:$0xf]
    %v160 = vld [vmem:[#allocation6 + $0x124] sm:$0xf]
    %v161 = vld [vmem:[#allocation6 + $0x128] sm:$0xf]
    %v162 = vld [vmem:[#allocation6 + $0x12c] sm:$0xf]
    %v163 = vld [vmem:[#allocation6 + $0x130] sm:$0xf]
    %v164 = vld [vmem:[#allocation6 + $0x134] sm:$0xf]
    %v165 = vld [vmem:[#allocation6 + $0x138] sm:$0xf]
    %v166 = vld [vmem:[#allocation6 + $0x13c] sm:$0xf]
    %v167 = vld [vmem:[#allocation6 + $0x140] sm:$0xf]
    %v168 = vld [vmem:[#allocation6 + $0x144] sm:$0xf]
    %v169 = vld [vmem:[#allocation6 + $0x148] sm:$0xf]
    %v170 = vld [vmem:[#allocation6 + $0x14c] sm:$0xf]
    %v171 = vld [vmem:[#allocation6 + $0x150] sm:$0xf]
    %v172 = vld [vmem:[#allocation6 + $0x154] sm:$0xf]
    %v173 = vld [vmem:[#allocation6 + $0x158] sm:$0xf]
    %v174 = vld [vmem:[#allocation6 + $0x15c] sm:$0xf]
    %v175 = vld [vmem:[#allocation6 + $0x160] sm:$0xf]
    %v176 = vld [vmem:[#allocation6 + $0x164] sm:$0xf]
    %v177 = vld [vmem:[#allocation6 + $0x168] sm:$0xf]
    %v178 = vld [vmem:[#allocation6 + $0x16c] sm:$0xf]
    %v179 = vld [vmem:[#allocation6 + $0x170] sm:$0xf]
    %v180 = vld [vmem:[#allocation6 + $0x174] sm:$0xf]
    %v181 = vld [vmem:[#allocation6 + $0x178] sm:$0xf]
    %v182 = vld [vmem:[#allocation6 + $0x17c] sm:$0xf]
    %v183 = vld [vmem:[#allocation6 + $0x180] sm:$0xf]
    %v184 = vld [vmem:[#allocation6 + $0x184] sm:$0xf]
    %v185 = vld [vmem:[#allocation6 + $0x188] sm:$0xf]
    %v186 = vld [vmem:[#allocation6 + $0x18c] sm:$0xf]
    %v187 = vld [vmem:[#allocation6 + $0x190] sm:$0xf]
    %v188 = vld [vmem:[#allocation6 + $0x194] sm:$0xf]
    %v189 = vld [vmem:[#allocation6 + $0x198] sm:$0xf]
    %v190 = vld [vmem:[#allocation6 + $0x19c] sm:$0xf]
    %v191 = vld [vmem:[#allocation6 + $0x1a0] sm:$0xf]
    %v192 = vld [vmem:[#allocation6 + $0x1a4] sm:$0xf]
    %v193 = vld [vmem:[#allocation6 + $0x1a8] sm:$0xf]
    %v194 = vld [vmem:[#allocation6 + $0x1ac] sm:$0xf]
    %v195 = vld [vmem:[#allocation6 + $0x1b0] sm:$0xf]
    %v196 = vld [vmem:[#allocation6 + $0x1b4] sm:$0xf]
    %v197 = vld [vmem:[#allocation6 + $0x1b8] sm:$0xf]
    %v198 = vld [vmem:[#allocation6 + $0x1bc] sm:$0xf]
    %v199 = vld [vmem:[#allocation6 + $0x1c0] sm:$0xf]
    %v200 = vld [vmem:[#allocation6 + $0x1c4] sm:$0xf]
    %v201 = vld [vmem:[#allocation6 + $0x1c8] sm:$0xf]
    %v202 = vld [vmem:[#allocation6 + $0x1cc] sm:$0xf]
    %v203 = vld [vmem:[#allocation6 + $0x1d0] sm:$0xf]
    %v204 = vld [vmem:[#allocation6 + $0x1d4] sm:$0xf]
    %v205 = vld [vmem:[#allocation6 + $0x1d8] sm:$0xf]
    %v206 = vld [vmem:[#allocation6 + $0x1dc] sm:$0xf]
    %v207 = vld [vmem:[#allocation6 + $0x1e0] sm:$0xf]
    %v208 = vld [vmem:[#allocation6 + $0x1e4] sm:$0xf]
    %v209 = vld [vmem:[#allocation6 + $0x1e8] sm:$0xf]
    %v210 = vld [vmem:[#allocation6 + $0x1ec] sm:$0xf]
    %v211 = vld [vmem:[#allocation6 + $0x1f0] sm:$0xf]
    %v212 = vld [vmem:[#allocation6 + $0x1f4] sm:$0xf]
    %v213 = vld [vmem:[#allocation6 + $0x1f8] sm:$0xf]
    %v214 = vld [vmem:[#allocation6 + $0x1fc] sm:$0xf]
    %v343 = vunpack.c.l.b16 %v87
    %v344 = vunpack.c.l.b16 %v88
    %v345 = vunpack.c.l.b16 %v89
    %v346 = vunpack.c.l.b16 %v90
    %v347 = vunpack.c.l.b16 %v91
    %v348 = vunpack.c.l.b16 %v92
    %v349 = vunpack.c.l.b16 %v93
    %v350 = vunpack.c.l.b16 %v94
    %v351 = vunpack.c.l.b16 %v95
    %v352 = vunpack.c.l.b16 %v96
    %v353 = vunpack.c.l.b16 %v97
    %v354 = vunpack.c.l.b16 %v98
    %v355 = vunpack.c.l.b16 %v99
    %v356 = vunpack.c.l.b16 %v100
    %v357 = vunpack.c.l.b16 %v101
    %v358 = vunpack.c.l.b16 %v102
    %v359 = vunpack.c.l.b16 %v103
    %v360 = vunpack.c.l.b16 %v104
    %v361 = vunpack.c.l.b16 %v105
    %v362 = vunpack.c.l.b16 %v106
    %v363 = vunpack.c.l.b16 %v107
    %v364 = vunpack.c.l.b16 %v108
    %v365 = vunpack.c.l.b16 %v109
    %v366 = vunpack.c.l.b16 %v110
    %v367 = vunpack.c.l.b16 %v111
    %v368 = vunpack.c.l.b16 %v112
    %v369 = vunpack.c.l.b16 %v113
    %v370 = vunpack.c.l.b16 %v114
    %v371 = vunpack.c.l.b16 %v115
    %v372 = vunpack.c.l.b16 %v116
    %v373 = vunpack.c.l.b16 %v117
    %v374 = vunpack.c.l.b16 %v118
    %v375 = vunpack.c.l.b16 %v119
    %v376 = vunpack.c.l.b16 %v120
    %v377 = vunpack.c.l.b16 %v121
    %v378 = vunpack.c.l.b16 %v122
    %v379 = vunpack.c.l.b16 %v123
    %v380 = vunpack.c.l.b16 %v124
    %v381 = vunpack.c.l.b16 %v125
    %v382 = vunpack.c.l.b16 %v126
    %v383 = vunpack.c.l.b16 %v127
    %v384 = vunpack.c.l.b16 %v128
    %v385 = vunpack.c.l.b16 %v129
    %v386 = vunpack.c.l.b16 %v130
    %v387 = vunpack.c.l.b16 %v131
    %v388 = vunpack.c.l.b16 %v132
    %v389 = vunpack.c.l.b16 %v133
    %v390 = vunpack.c.l.b16 %v134
    %v391 = vunpack.c.l.b16 %v135
    %v392 = vunpack.c.l.b16 %v136
    %v393 = vunpack.c.l.b16 %v137
    %v394 = vunpack.c.l.b16 %v138
    %v395 = vunpack.c.l.b16 %v139
    %v396 = vunpack.c.l.b16 %v140
    %v397 = vunpack.c.l.b16 %v141
    %v398 = vunpack.c.l.b16 %v142
    %v399 = vunpack.c.l.b16 %v143
    %v400 = vunpack.c.l.b16 %v144
    %v401 = vunpack.c.l.b16 %v145
    %v402 = vunpack.c.l.b16 %v146
    %v403 = vunpack.c.l.b16 %v147
    %v404 = vunpack.c.l.b16 %v148
    %v405 = vunpack.c.l.b16 %v149
    %v406 = vunpack.c.l.b16 %v150
    %v407 = vunpack.c.l.b16 %v151
    %v408 = vunpack.c.l.b16 %v152
    %v409 = vunpack.c.l.b16 %v153
    %v410 = vunpack.c.l.b16 %v154
    %v411 = vunpack.c.l.b16 %v155
    %v412 = vunpack.c.l.b16 %v156
    %v413 = vunpack.c.l.b16 %v157
    %v414 = vunpack.c.l.b16 %v158
    %v415 = vunpack.c.l.b16 %v159
    %v416 = vunpack.c.l.b16 %v160
    %v417 = vunpack.c.l.b16 %v161
    %v418 = vunpack.c.l.b16 %v162
    %v419 = vunpack.c.l.b16 %v163
    %v420 = vunpack.c.l.b16 %v164
    %v421 = vunpack.c.l.b16 %v165
    %v422 = vunpack.c.l.b16 %v166
    %v423 = vunpack.c.l.b16 %v167
    %v424 = vunpack.c.l.b16 %v168
    %v425 = vunpack.c.l.b16 %v169
    %v426 = vunpack.c.l.b16 %v170
    %v427 = vunpack.c.l.b16 %v171
    %v428 = vunpack.c.l.b16 %v172
    %v429 = vunpack.c.l.b16 %v173
    %v430 = vunpack.c.l.b16 %v174
    %v431 = vunpack.c.l.b16 %v175
    %v432 = vunpack.c.l.b16 %v176
    %v433 = vunpack.c.l.b16 %v177
    %v434 = vunpack.c.l.b16 %v178
    %v435 = vunpack.c.l.b16 %v179
    %v436 = vunpack.c.l.b16 %v180
    %v437 = vunpack.c.l.b16 %v181
    %v438 = vunpack.c.l.b16 %v182
    %v439 = vunpack.c.l.b16 %v183
    %v440 = vunpack.c.l.b16 %v184
    %v441 = vunpack.c.l.b16 %v185
    %v442 = vunpack.c.l.b16 %v186
    %v443 = vunpack.c.l.b16 %v187
    %v444 = vunpack.c.l.b16 %v188
    %v445 = vunpack.c.l.b16 %v189
    %v446 = vunpack.c.l.b16 %v190
    %v447 = vunpack.c.l.b16 %v191
    %v448 = vunpack.c.l.b16 %v192
    %v449 = vunpack.c.l.b16 %v193
    %v450 = vunpack.c.l.b16 %v194
    %v451 = vunpack.c.l.b16 %v195
    %v452 = vunpack.c.l.b16 %v196
    %v453 = vunpack.c.l.b16 %v197
    %v454 = vunpack.c.l.b16 %v198
    %v455 = vunpack.c.l.b16 %v199
    %v456 = vunpack.c.l.b16 %v200
    %v457 = vunpack.c.l.b16 %v201
    %v458 = vunpack.c.l.b16 %v202
    %v459 = vunpack.c.l.b16 %v203
    %v460 = vunpack.c.l.b16 %v204
    %v461 = vunpack.c.l.b16 %v205
    %v462 = vunpack.c.l.b16 %v206
    %v463 = vunpack.c.l.b16 %v207
    %v464 = vunpack.c.l.b16 %v208
    %v465 = vunpack.c.l.b16 %v209
    %v466 = vunpack.c.l.b16 %v210
    %v467 = vunpack.c.l.b16 %v211
    %v468 = vunpack.c.l.b16 %v212
    %v469 = vunpack.c.l.b16 %v213
    %v470 = vunpack.c.l.b16 %v214
    %v471 = vpack.c.b16 %v344, %v343
    %v472 = vpack.c.b16 %v346, %v345
    %v473 = vpack.c.b16 %v348, %v347
    %v474 = vpack.c.b16 %v350, %v349
    %v475 = vpack.c.b16 %v352, %v351
    %v476 = vpack.c.b16 %v354, %v353
    %v477 = vpack.c.b16 %v356, %v355
    %v478 = vpack.c.b16 %v358, %v357
    %v479 = vpack.c.b16 %v360, %v359
    %v480 = vpack.c.b16 %v362, %v361
    %v481 = vpack.c.b16 %v364, %v363
    %v482 = vpack.c.b16 %v366, %v365
    %v483 = vpack.c.b16 %v368, %v367
    %v484 = vpack.c.b16 %v370, %v369
    %v485 = vpack.c.b16 %v372, %v371
    %v486 = vpack.c.b16 %v374, %v373
    %v487 = vpack.c.b16 %v376, %v375
    %v488 = vpack.c.b16 %v378, %v377
    %v489 = vpack.c.b16 %v380, %v379
    %v490 = vpack.c.b16 %v382, %v381
    %v491 = vpack.c.b16 %v384, %v383
    %v492 = vpack.c.b16 %v386, %v385
    %v493 = vpack.c.b16 %v388, %v387
    %v494 = vpack.c.b16 %v390, %v389
    %v495 = vpack.c.b16 %v392, %v391
    %v496 = vpack.c.b16 %v394, %v393
    %v497 = vpack.c.b16 %v396, %v395
    %v498 = vpack.c.b16 %v398, %v397
    %v499 = vpack.c.b16 %v400, %v399
    %v500 = vpack.c.b16 %v402, %v401
    %v501 = vpack.c.b16 %v404, %v403
    %v502 = vpack.c.b16 %v406, %v405
    %v503 = vpack.c.b16 %v408, %v407
    %v504 = vpack.c.b16 %v410, %v409
    %v505 = vpack.c.b16 %v412, %v411
    %v506 = vpack.c.b16 %v414, %v413
    %v507 = vpack.c.b16 %v416, %v415
    %v508 = vpack.c.b16 %v418, %v417
    %v509 = vpack.c.b16 %v420, %v419
    %v510 = vpack.c.b16 %v422, %v421
    %v511 = vpack.c.b16 %v424, %v423
    %v512 = vpack.c.b16 %v426, %v425
    %v513 = vpack.c.b16 %v428, %v427
    %v514 = vpack.c.b16 %v430, %v429
    %v515 = vpack.c.b16 %v432, %v431
    %v516 = vpack.c.b16 %v434, %v433
    %v517 = vpack.c.b16 %v436, %v435
    %v518 = vpack.c.b16 %v438, %v437
    %v519 = vpack.c.b16 %v440, %v439
    %v520 = vpack.c.b16 %v442, %v441
    %v521 = vpack.c.b16 %v444, %v443
    %v522 = vpack.c.b16 %v446, %v445
    %v523 = vpack.c.b16 %v448, %v447
    %v524 = vpack.c.b16 %v450, %v449
    %v525 = vpack.c.b16 %v452, %v451
    %v526 = vpack.c.b16 %v454, %v453
    %v527 = vpack.c.b16 %v456, %v455
    %v528 = vpack.c.b16 %v458, %v457
    %v529 = vpack.c.b16 %v460, %v459
    %v530 = vpack.c.b16 %v462, %v461
    %v531 = vpack.c.b16 %v464, %v463
    %v532 = vpack.c.b16 %v466, %v465
    %v533 = vpack.c.b16 %v468, %v467
    %v534 = vpack.c.b16 %v470, %v469
    %599 = vmatprep.subr.bf16.mxu0 0
    %600 = vmatpush1.bf16.msra.mxu0 %v471
    %601 = vmatprep.subr.bf16.mxu0 0
    %602 = vmatpush1.bf16.msra.mxu0 %v472
    %603 = vmatprep.subr.bf16.mxu0 0
    %604 = vmatpush1.bf16.msra.mxu0 %v473
    %605 = vmatprep.subr.bf16.mxu0 0
    %606 = vmatpush1.bf16.msra.mxu0 %v474
    %607 = vmatprep.subr.bf16.mxu0 0
    %608 = vmatpush1.bf16.msra.mxu0 %v475
    %609 = vmatprep.subr.bf16.mxu0 0
    %610 = vmatpush1.bf16.msra.mxu0 %v476
    %611 = vmatprep.subr.bf16.mxu0 0
    %612 = vmatpush1.bf16.msra.mxu0 %v477
    %613 = vmatprep.subr.bf16.mxu0 0
    %614 = vmatpush1.bf16.msra.mxu0 %v478
    %615 = vmatprep.subr.bf16.mxu0 0
    %616 = vmatpush1.bf16.msra.mxu0 %v479
    %617 = vmatprep.subr.bf16.mxu0 0
    %618 = vmatpush1.bf16.msra.mxu0 %v480
    %619 = vmatprep.subr.bf16.mxu0 0
    %620 = vmatpush1.bf16.msra.mxu0 %v481
    %621 = vmatprep.subr.bf16.mxu0 0
    %622 = vmatpush1.bf16.msra.mxu0 %v482
    %623 = vmatprep.subr.bf16.mxu0 0
    %624 = vmatpush1.bf16.msra.mxu0 %v483
    %625 = vmatprep.subr.bf16.mxu0 0
    %626 = vmatpush1.bf16.msra.mxu0 %v484
    %627 = vmatprep.subr.bf16.mxu0 0
    %628 = vmatpush1.bf16.msra.mxu0 %v485
    %629 = vmatprep.subr.bf16.mxu0 0
    %630 = vmatpush1.bf16.msra.mxu0 %v486
    %631 = vmatprep.mubr.bf16.mxu0 %v80
    %632 = vmatmul.mubr.bf16.gmra.mrb[0].mxu0 %v79
    %v633 = vpop.f32.mrb[0].mxu0
    %v634 = vadd.f32 0.0, %v633
    %v635 = vpop.f32.mrb[0].mxu0
    %v636 = vpop.f32.mrb[0].mxu0
    %v637 = vpop.f32.mrb[0].mxu0
    %638 = vdwg.mxu0
    %639 = vmatprep.subr.bf16.mxu0 0
    %640 = vmatpush1.bf16.msra.mxu0 %v487
    %641 = vmatprep.subr.bf16.mxu0 0
    %642 = vmatpush1.bf16.msra.mxu0 %v488
    %643 = vmatprep.subr.bf16.mxu0 0
    %644 = vmatpush1.bf16.msra.mxu0 %v489
    %645 = vmatprep.subr.bf16.mxu0 0
    %646 = vmatpush1.bf16.msra.mxu0 %v490
    %647 = vmatprep.subr.bf16.mxu0 0
    %648 = vmatpush1.bf16.msra.mxu0 %v491
    %649 = vmatprep.subr.bf16.mxu0 0
    %650 = vmatpush1.bf16.msra.mxu0 %v492
    %651 = vmatprep.subr.bf16.mxu0 0
    %652 = vmatpush1.bf16.msra.mxu0 %v493
    %653 = vmatprep.subr.bf16.mxu0 0
    %654 = vmatpush1.bf16.msra.mxu0 %v494
    %655 = vmatprep.subr.bf16.mxu0 0
    %656 = vmatpush1.bf16.msra.mxu0 %v495
    %657 = vmatprep.subr.bf16.mxu0 0
    %658 = vmatpush1.bf16.msra.mxu0 %v496
    %659 = vmatprep.subr.bf16.mxu0 0
    %660 = vmatpush1.bf16.msra.mxu0 %v497
    %661 = vmatprep.subr.bf16.mxu0 0
    %662 = vmatpush1.bf16.msra.mxu0 %v498
    %663 = vmatprep.subr.bf16.mxu0 0
    %664 = vmatpush1.bf16.msra.mxu0 %v499
    %665 = vmatprep.subr.bf16.mxu0 0
    %666 = vmatpush1.bf16.msra.mxu0 %v500
    %667 = vmatprep.subr.bf16.mxu0 0
    %668 = vmatpush1.bf16.msra.mxu0 %v501
    %669 = vmatprep.subr.bf16.mxu0 0
    %670 = vmatpush1.bf16.msra.mxu0 %v502
    %671 = vmatprep.mubr.bf16.mxu0 %v82
    %672 = vmatmul.mubr.bf16.gmra.mrb[0].mxu0 %v81
    %v673 = vpop.f32.mrb[0].mxu0
    %v674 = vadd.f32 %v634, %v673
    %v675 = vpop.f32.mrb[0].mxu0
    %v676 = vpop.f32.mrb[0].mxu0
    %v677 = vpop.f32.mrb[0].mxu0
    %678 = vdwg.mxu0
    %679 = vmatprep.subr.bf16.mxu0 0
    %680 = vmatpush1.bf16.msra.mxu0 %v503
    %681 = vmatprep.subr.bf16.mxu0 0
    %682 = vmatpush1.bf16.msra.mxu0 %v504
    %683 = vmatprep.subr.bf16.mxu0 0
    %684 = vmatpush1.bf16.msra.mxu0 %v505
    %685 = vmatprep.subr.bf16.mxu0 0
    %686 = vmatpush1.bf16.msra.mxu0 %v506
    %687 = vmatprep.subr.bf16.mxu0 0
    %688 = vmatpush1.bf16.msra.mxu0 %v507
    %689 = vmatprep.subr.bf16.mxu0 0
    %690 = vmatpush1.bf16.msra.mxu0 %v508
    %691 = vmatprep.subr.bf16.mxu0 0
    %692 = vmatpush1.bf16.msra.mxu0 %v509
    %693 = vmatprep.subr.bf16.mxu0 0
    %694 = vmatpush1.bf16.msra.mxu0 %v510
    %695 = vmatprep.subr.bf16.mxu0 0
    %696 = vmatpush1.bf16.msra.mxu0 %v511
    %697 = vmatprep.subr.bf16.mxu0 0
    %698 = vmatpush1.bf16.msra.mxu0 %v512
    %699 = vmatprep.subr.bf16.mxu0 0
    %700 = vmatpush1.bf16.msra.mxu0 %v513
    %701 = vmatprep.subr.bf16.mxu0 0
    %702 = vmatpush1.bf16.msra.mxu0 %v514
    %703 = vmatprep.subr.bf16.mxu0 0
    %704 = vmatpush1.bf16.msra.mxu0 %v515
    %705 = vmatprep.subr.bf16.mxu0 0
    %706 = vmatpush1.bf16.msra.mxu0 %v516
    %707 = vmatprep.subr.bf16.mxu0 0
    %708 = vmatpush1.bf16.msra.mxu0 %v517
    %709 = vmatprep.subr.bf16.mxu0 0
    %710 = vmatpush1.bf16.msra.mxu0 %v518
    %711 = vmatprep.mubr.bf16.mxu0 %v84
    %712 = vmatmul.mubr.bf16.gmra.mrb[0].mxu0 %v83
    %v713 = vpop.f32.mrb[0].mxu0
    %v714 = vadd.f32 %v674, %v713
    %v715 = vpop.f32.mrb[0].mxu0
    %v716 = vpop.f32.mrb[0].mxu0
    %v717 = vpop.f32.mrb[0].mxu0
    %718 = vdwg.mxu0
    %719 = vmatprep.subr.bf16.mxu0 0
    %720 = vmatpush1.bf16.msra.mxu0 %v519
    %721 = vmatprep.subr.bf16.mxu0 0
    %722 = vmatpush1.bf16.msra.mxu0 %v520
    %723 = vmatprep.subr.bf16.mxu0 0
    %724 = vmatpush1.bf16.msra.mxu0 %v521
    %725 = vmatprep.subr.bf16.mxu0 0
    %726 = vmatpush1.bf16.msra.mxu0 %v522
    %727 = vmatprep.subr.bf16.mxu0 0
    %728 = vmatpush1.bf16.msra.mxu0 %v523
    %729 = vmatprep.subr.bf16.mxu0 0
    %730 = vmatpush1.bf16.msra.mxu0 %v524
    %731 = vmatprep.subr.bf16.mxu0 0
    %732 = vmatpush1.bf16.msra.mxu0 %v525
    %733 = vmatprep.subr.bf16.mxu0 0
    %734 = vmatpush1.bf16.msra.mxu0 %v526
    %735 = vmatprep.subr.bf16.mxu0 0
    %736 = vmatpush1.bf16.msra.mxu0 %v527
    %737 = vmatprep.subr.bf16.mxu0 0
    %738 = vmatpush1.bf16.msra.mxu0 %v528
    %739 = vmatprep.subr.bf16.mxu0 0
    %740 = vmatpush1.bf16.msra.mxu0 %v529
    %741 = vmatprep.subr.bf16.mxu0 0
    %742 = vmatpush1.bf16.msra.mxu0 %v530
    %743 = vmatprep.subr.bf16.mxu0 0
    %744 = vmatpush1.bf16.msra.mxu0 %v531
    %745 = vmatprep.subr.bf16.mxu0 0
    %746 = vmatpush1.bf16.msra.mxu0 %v532
    %747 = vmatprep.subr.bf16.mxu0 0
    %748 = vmatpush1.bf16.msra.mxu0 %v533
    %749 = vmatprep.subr.bf16.mxu0 0
    %750 = vmatpush1.bf16.msra.mxu0 %v534
    %751 = vmatprep.mubr.bf16.mxu0 %v86
    %752 = vmatmul.mubr.bf16.gmra.mrb[0].mxu0 %v85
    %v753 = vpop.f32.mrb[0].mxu0
    %v754 = vadd.f32 %v714, %v753
    %v755 = vpop.f32.mrb[0].mxu0
    %v756 = vpop.f32.mrb[0].mxu0
    %v757 = vpop.f32.mrb[0].mxu0
    %758 = vdwg.mxu0
    %v759 = vadd.f32 %v70, %v754
    %760 = vst [vmem:[#allocation2] sm:$0xff] %v759
    // Predicated region
    $region34: #{tpu_custom_call.1} parent=1 // pred_check
      %p761 = pneg %p58
    $region35: #{tpu_custom_call.1} parent=1 // pred_check_branch
      %763 = sbr.rel (%p761) target = $region37
    $region36: #{tpu_custom_call.1} parent=1 // pred_region
      %v764 = vld [vmem:[#allocation2] sm:$0xff]
      %v765 = vmul.f32 %v764, %v764
      %766 = vadd.xlane.f32.xlu0 %v765
      %v767 = vpop.xlane.xlu0 %766
      %v768 = vmax.f32 %v767, 1e-24
      %v769 = vrsqrt.pop %v768
      %v770 = vmul.f32 %v764, %v769
      %v771 = vpack.c.bf16 %v770, %v770
      %v772 = vld [vmem:[#allocation8] sm:$0xf]
      %v773 = vld [vmem:[#allocation8 + $0x4] sm:$0xf]
      %v774 = vld [vmem:[#allocation8 + $0x8] sm:$0xf]
      %v775 = vld [vmem:[#allocation8 + $0xc] sm:$0xf]
      %v776 = vld [vmem:[#allocation8 + $0x10] sm:$0xf]
      %v777 = vld [vmem:[#allocation8 + $0x14] sm:$0xf]
      %v778 = vld [vmem:[#allocation8 + $0x18] sm:$0xf]
      %v779 = vld [vmem:[#allocation8 + $0x1c] sm:$0xf]
      %v780 = vld [vmem:[#allocation8 + $0x20] sm:$0xf]
      %v781 = vld [vmem:[#allocation8 + $0x24] sm:$0xf]
      %v782 = vld [vmem:[#allocation8 + $0x28] sm:$0xf]
      %v783 = vld [vmem:[#allocation8 + $0x2c] sm:$0xf]
      %v784 = vld [vmem:[#allocation8 + $0x30] sm:$0xf]
      %v785 = vld [vmem:[#allocation8 + $0x34] sm:$0xf]
      %v786 = vld [vmem:[#allocation8 + $0x38] sm:$0xf]
      %v787 = vld [vmem:[#allocation8 + $0x3c] sm:$0xf]
      %v804 = vunpack.c.l.b16 %v772
      %v805 = vunpack.c.l.b16 %v773
      %v806 = vunpack.c.l.b16 %v774
      %v807 = vunpack.c.l.b16 %v775
      %v808 = vunpack.c.l.b16 %v776
      %v809 = vunpack.c.l.b16 %v777
      %v810 = vunpack.c.l.b16 %v778
      %v811 = vunpack.c.l.b16 %v779
      %v812 = vunpack.c.l.b16 %v780
      %v813 = vunpack.c.l.b16 %v781
      %v814 = vunpack.c.l.b16 %v782
      %v815 = vunpack.c.l.b16 %v783
      %v816 = vunpack.c.l.b16 %v784
      %v817 = vunpack.c.l.b16 %v785
      %v818 = vunpack.c.l.b16 %v786
      %v819 = vunpack.c.l.b16 %v787
      %v820 = vpack.c.b16 %v805, %v804
      %v821 = vpack.c.b16 %v807, %v806
      %v822 = vpack.c.b16 %v809, %v808
      %v823 = vpack.c.b16 %v811, %v810
      %v824 = vpack.c.b16 %v813, %v812
      %v825 = vpack.c.b16 %v815, %v814
      %v826 = vpack.c.b16 %v817, %v816
      %v827 = vpack.c.b16 %v819, %v818
      %836 = vmatprep.subr.bf16.mxu0 0
      %837 = vmatpush1.bf16.msra.mxu0 %v820
      %838 = vmatprep.subr.bf16.mxu0 0
      %839 = vmatpush1.bf16.msra.mxu0 %v821
      %840 = vmatprep.subr.bf16.mxu0 0
      %841 = vmatpush1.bf16.msra.mxu0 %v822
      %842 = vmatprep.subr.bf16.mxu0 0
      %843 = vmatpush1.bf16.msra.mxu0 %v823
      %844 = vmatprep.subr.bf16.mxu0 0
      %845 = vmatpush1.bf16.msra.mxu0 %v824
      %846 = vmatprep.subr.bf16.mxu0 0
      %847 = vmatpush1.bf16.msra.mxu0 %v825
      %848 = vmatprep.subr.bf16.mxu0 0
      %849 = vmatpush1.bf16.msra.mxu0 %v826
      %850 = vmatprep.subr.bf16.mxu0 0
      %851 = vmatpush1.bf16.msra.mxu0 %v827
      %852 = vmatprep.subr.bf16.mxu0 0
      %853 = vmatpush1.bf16.msra.mxu0 0
      %854 = vmatprep.subr.bf16.mxu0 0
      %855 = vmatpush1.bf16.msra.mxu0 0
      %856 = vmatprep.subr.bf16.mxu0 0
      %857 = vmatpush1.bf16.msra.mxu0 0
      %858 = vmatprep.subr.bf16.mxu0 0
      %859 = vmatpush1.bf16.msra.mxu0 0
      %860 = vmatprep.subr.bf16.mxu0 0
      %861 = vmatpush1.bf16.msra.mxu0 0
      %862 = vmatprep.subr.bf16.mxu0 0
      %863 = vmatpush1.bf16.msra.mxu0 0
      %864 = vmatprep.subr.bf16.mxu0 0
      %865 = vmatpush1.bf16.msra.mxu0 0
      %866 = vmatprep.subr.bf16.mxu0 0
      %867 = vmatpush1.bf16.msra.mxu0 0
      %868 = vmatprep.mubr.bf16.mxu0 0
      %869 = vmatmul.mubr.bf16.gmra.mrb[0].mxu0 %v771
      %v870 = vpop.f32.mrb[0].mxu0
      %v871 = vadd.f32 0.0, %v870
      %v872 = vpop.f32.mrb[0].mxu0
      %v873 = vpop.f32.mrb[0].mxu0
      %v874 = vpop.f32.mrb[0].mxu0
      %875 = vdwg.mxu0
      %876 = vst [vmem:[#allocation9] sm:$0xff] %v871
    $region37: #{tpu_custom_call.1} parent=1 // pred_fallthru
      _
    // Predicated region
    $region38: #{tpu_custom_call.1} parent=1 // pred_check
      _
    $region39: #{tpu_custom_call.1} parent=1 // pred_check_branch
      %878 = sbr.rel (0) target = $region41
    $region40: #{tpu_custom_call.1} parent=1 // pred_region
      %s880 = ssub.s32 128, 128
      %881 = vsyncadd [#allocation5], %s880
      %s883 = sshll.u32 [#allocation9], 4
      %s884 = int_to_ptr.vmem [resolvable:$true] %s883
      %886 = dma.vmem_to_hbm [thread:$0]  %s884, 128, %s4, [#allocation5]
    $region41: #{tpu_custom_call.1} parent=1 // pred_fallthru
      _
    // Predicated region
    $region42: #{tpu_custom_call.1} parent=1 // pred_check
      _
    $region43: #{tpu_custom_call.1} parent=1 // pred_check_branch
      %888 = sbr.rel (0) target = $region45
    $region44: #{tpu_custom_call.1} parent=1 // pred_region
      %889 = dma.done [#allocation5], 128
    $region45: #{tpu_custom_call.1} parent=1 // pred_fallthru
      _
    %890 = vsyncpa [#allocation4], 1
    %891 = vsyncpa [#allocation7], 1
    %892 = vsyncpa [#allocation5], 1

// kernel: tpu_custom_call.1
$region0: #{tpu_custom_call.1}
  #allocation0 [shape = 'u32[]', space=smem, size = 0x4, offset = 0x4, fixed_abs, tag = 'smem constant byte address 0x4 - core index']
  #allocation1 [shape = 'u32[144,128]{1,0:T(1,128)}', space=vmem, size = 0x12000, scoped, tag = 'internal scratch']
  #allocation2 [shape = 'f32[8,128]{1,0:T(8,128)}', space=vmem, size = 0x1000, scoped, tag = 'scratch operand']
  %s0 = inlined_call_operand.hbm [shape: f32[8,1024], index: 0, kind: input, shape index: {}]
  %s1 = inlined_call_operand.hbm [shape: bf16[1024,128], index: 1, kind: input, shape index: {}]
  %s2 = inlined_call_operand.vmem [shape: f32[1,128], index: 2, kind: input, shape index: {}]
  %s3 = inlined_call_operand.hbm [shape: bf16[128,128], index: 3, kind: input, shape index: {}]
  %s4 = inlined_call_operand.hbm [shape: f32[8,128], index: 4, kind: output, shape index: {}]
  %s5 = sld [smem:[#allocation0]]
  $region46: #{tpu_custom_call.1} parent=0
    _
  %s7 = ssub.s32 1, %s5
  %s8 = scalar_select 0, %s7, %s5
  $region1: #{tpu_custom_call.1} parent=0
    #allocation3 [shape = 'u8[32768]{0}', space=vmem, size = 0x8000, scoped, tag = 'input window, operand 0, single buffered']
    #allocation4 [shape = 's32[1]{0}', space=sflag, size = 0x4, scoped, tag = 'scoped memory for tpu_custom_call.1']
    #allocation5 [shape = 's32[1]{0}', space=sflag, size = 0x4, scoped, tag = 'scoped memory for tpu_custom_call.1']
    #allocation6 [shape = 'u8[262144]{0}', space=vmem, size = 0x40000, scoped, tag = 'input window, operand 1, single buffered']
    #allocation7 [shape = 's32[1]{0}', space=sflag, size = 0x4, scoped, tag = 'scoped memory for tpu_custom_call.1']
    #allocation8 [shape = 'u8[32768]{0}', space=vmem, size = 0x8000, scoped, tag = 'input window, operand 3, single buffered']
    #allocation9 [shape = 'u8[4096]{0}', space=vmem, size = 0x1000, scoped, tag = 'output window, operand 0, single buffered']
    %9 = vsyncpa [#allocation4], 0
    %10 = vsyncpa [#allocation7], 0
    %11 = vsyncpa [#allocation5], 0
    // Predicated region
    $region2: #{tpu_custom_call.1} parent=1 // pred_check
      _
    $region3: #{tpu_custom_call.1} parent=1 // pred_check_branch
      %13 = sbr.rel (0) target = $region5
    $region4: #{tpu_custom_call.1} parent=1 // pred_region
      %s15 = ssub.s32 1024, 1024
      %16 = vsyncadd [#allocation4], %s15
      %s18 = sshll.u32 [#allocation3], 4
      %s19 = int_to_ptr.vmem [resolvable:$true] %s18
      %21 = dma.hbm_to_vmem [thread:$0]  %s0, 1024, %s19, [#allocation4]
    $region5: #{tpu_custom_call.1} parent=1 // pred_fallthru
      _
    // Predicated region
    $region6: #{tpu_custom_call.1} parent=1 // pred_check
      _
    $region7: #{tpu_custom_call.1} parent=1 // pred_check_branch
      %23 = sbr.rel (0) target = $region9
    $region8: #{tpu_custom_call.1} parent=1 // pred_region
      %s25 = ssub.s32 8192, 8192
      %26 = vsyncadd [#allocation7], %s25
      %s27 = sshll.u32 [#allocation6], 4
      %s28 = int_to_ptr.vmem [resolvable:$true] %s27
      %33 = dma.hbm_to_vmem [thread:$0]  %s1, 8192, %s28, [#allocation7], 64, 64, 4
    $region9: #{tpu_custom_call.1} parent=1 // pred_fallthru
      _
    // Predicated region
    $region10: #{tpu_custom_call.1} parent=1 // pred_check
      _
    $region11: #{tpu_custom_call.1} parent=1 // pred_check_branch
      %35 = sbr.rel (0) target = $region13
    $region12: #{tpu_custom_call.1} parent=1 // pred_region
      _
    $region13: #{tpu_custom_call.1} parent=1 // pred_fallthru
      _
    // Predicated region
    $region14: #{tpu_custom_call.1} parent=1 // pred_check
      _
    $region15: #{tpu_custom_call.1} parent=1 // pred_check_branch
      %37 = sbr.rel (0) target = $region17
    $region16: #{tpu_custom_call.1} parent=1 // pred_region
      %s39 = ssub.s32 1024, 1024
      %40 = vsyncadd [#allocation7], %s39
      %s41 = sshll.u32 [#allocation8], 4
      %s42 = int_to_ptr.vmem [resolvable:$true] %s41
      %47 = dma.hbm_to_vmem [thread:$0]  %s3, 1024, %s42, [#allocation7], 64, 64, 4
    $region17: #{tpu_custom_call.1} parent=1 // pred_fallthru
      _
    // Predicated region
    $region18: #{tpu_custom_call.1} parent=1 // pred_check
      _
    $region19: #{tpu_custom_call.1} parent=1 // pred_check_branch
      %49 = sbr.rel (0) target = $region21
    $region20: #{tpu_custom_call.1} parent=1 // pred_region
      %50 = dma.done [#allocation4], 1024
    $region21: #{tpu_custom_call.1} parent=1 // pred_fallthru
      _
    // Predicated region
    $region22: #{tpu_custom_call.1} parent=1 // pred_check
      _
    $region23: #{tpu_custom_call.1} parent=1 // pred_check_branch
      %52 = sbr.rel (0) target = $region25
    $region24: #{tpu_custom_call.1} parent=1 // pred_region
      %53 = dma.done [#allocation7], 8192
    $region25: #{tpu_custom_call.1} parent=1 // pred_fallthru
      _
    // Predicated region
    $region26: #{tpu_custom_call.1} parent=1 // pred_check
      _
    $region27: #{tpu_custom_call.1} parent=1 // pred_check_branch
      %55 = sbr.rel (0) target = $region29
    $region28: #{tpu_custom_call.1} parent=1 // pred_region
      %56 = dma.done [#allocation7], 1024
    $region29: #{tpu_custom_call.1} parent=1 // pred_fallthru
      _
    %p58 = scmp.eq.s32.totalorder 0, 0
    // Predicated region
    $region30: #{tpu_custom_call.1} parent=1 // pred_check
      %p59 = pneg %p58
    $region31: #{tpu_custom_call.1} parent=1 // pred_check_branch
      %61 = sbr.rel (%p59) target = $region33
    $region32: #{tpu_custom_call.1} parent=1 // pred_region
      %v62 = vld [vmem:[%s2] sm:$0x1]
      %v64 = vlaneseq
      %v65 = vshrl.u32 %v64, 7
      %v66 = vsub.s32 0, %v65
      %v67 = vrot.slane %v62, %v66
      %69 = vst [vmem:[#allocation2] sm:$0xff] %v67
    $region33: #{tpu_custom_call.1} parent=1 // pred_fallthru
      _
    %v70 = vld [vmem:[#allocation2] sm:$0xff]
    %v71 = vld [vmem:[#allocation3] sm:$0xff]
    %v72 = vld [vmem:[#allocation3 + $0x8] sm:$0xff]
    %v73 = vld [vmem:[#allocation3 + $0x10] sm:$0xff]
    %v74 = vld [vmem:[#allocation3 + $0x18] sm:$0xff]
    %v75 = vld [vmem:[#allocation3 + $0x20] sm:$0xff]
    %v76 = vld [vmem:[#allocation3 + $0x28] sm:$0xff]
    %v77 = vld [vmem:[#allocation3 + $0x30] sm:$0xff]
    %v78 = vld [vmem:[#allocation3 + $0x38] sm:$0xff]
    %v79 = vpack.c.bf16 %v71, %v71
    %v80 = vpack.c.bf16 %v72, %v72
    %v81 = vpack.c.bf16 %v73, %v73
    %v82 = vpack.c.bf16 %v74, %v74
    %v83 = vpack.c.bf16 %v75, %v75
    %v84 = vpack.c.bf16 %v76, %v76
    %v85 = vpack.c.bf16 %v77, %v77
    %v86 = vpack.c.bf16 %v78, %v78
    %v87 = vld [vmem:[#allocation6] sm:$0xf]
    %v88 = vld [vmem:[#allocation6 + $0x4] sm:$0xf]
    %v89 = vld [vmem:[#allocation6 + $0x8] sm:$0xf]
    %v90 = vld [vmem:[#allocation6 + $0xc] sm:$0xf]
    %v91 = vld [vmem:[#allocation6 + $0x10] sm:$0xf]
    %v92 = vld [vmem:[#allocation6 + $0x14] sm:$0xf]
    %v93 = vld [vmem:[#allocation6 + $0x18] sm:$0xf]
    %v94 = vld [vmem:[#allocation6 + $0x1c] sm:$0xf]
    %v95 = vld [vmem:[#allocation6 + $0x20] sm:$0xf]
    %v96 = vld [vmem:[#allocation6 + $0x24] sm:$0xf]
    %v97 = vld [vmem:[#allocation6 + $0x28] sm:$0xf]
    %v98 = vld [vmem:[#allocation6 + $0x2c] sm:$0xf]
    %v99 = vld [vmem:[#allocation6 + $0x30] sm:$0xf]
    %v100 = vld [vmem:[#allocation6 + $0x34] sm:$0xf]
    %v101 = vld [vmem:[#allocation6 + $0x38] sm:$0xf]
    %v102 = vld [vmem:[#allocation6 + $0x3c] sm:$0xf]
    %v103 = vld [vmem:[#allocation6 + $0x40] sm:$0xf]
    %v104 = vld [vmem:[#allocation6 + $0x44] sm:$0xf]
    %v105 = vld [vmem:[#allocation6 + $0x48] sm:$0xf]
    %v106 = vld [vmem:[#allocation6 + $0x4c] sm:$0xf]
    %v107 = vld [vmem:[#allocation6 + $0x50] sm:$0xf]
    %v108 = vld [vmem:[#allocation6 + $0x54] sm:$0xf]
    %v109 = vld [vmem:[#allocation6 + $0x58] sm:$0xf]
    %v110 = vld [vmem:[#allocation6 + $0x5c] sm:$0xf]
    %v111 = vld [vmem:[#allocation6 + $0x60] sm:$0xf]
    %v112 = vld [vmem:[#allocation6 + $0x64] sm:$0xf]
    %v113 = vld [vmem:[#allocation6 + $0x68] sm:$0xf]
    %v114 = vld [vmem:[#allocation6 + $0x6c] sm:$0xf]
    %v115 = vld [vmem:[#allocation6 + $0x70] sm:$0xf]
    %v116 = vld [vmem:[#allocation6 + $0x74] sm:$0xf]
    %v117 = vld [vmem:[#allocation6 + $0x78] sm:$0xf]
    %v118 = vld [vmem:[#allocation6 + $0x7c] sm:$0xf]
    %v119 = vld [vmem:[#allocation6 + $0x80] sm:$0xf]
    %v120 = vld [vmem:[#allocation6 + $0x84] sm:$0xf]
    %v121 = vld [vmem:[#allocation6 + $0x88] sm:$0xf]
    %v122 = vld [vmem:[#allocation6 + $0x8c] sm:$0xf]
    %v123 = vld [vmem:[#allocation6 + $0x90] sm:$0xf]
    %v124 = vld [vmem:[#allocation6 + $0x94] sm:$0xf]
    %v125 = vld [vmem:[#allocation6 + $0x98] sm:$0xf]
    %v126 = vld [vmem:[#allocation6 + $0x9c] sm:$0xf]
    %v127 = vld [vmem:[#allocation6 + $0xa0] sm:$0xf]
    %v128 = vld [vmem:[#allocation6 + $0xa4] sm:$0xf]
    %v129 = vld [vmem:[#allocation6 + $0xa8] sm:$0xf]
    %v130 = vld [vmem:[#allocation6 + $0xac] sm:$0xf]
    %v131 = vld [vmem:[#allocation6 + $0xb0] sm:$0xf]
    %v132 = vld [vmem:[#allocation6 + $0xb4] sm:$0xf]
    %v133 = vld [vmem:[#allocation6 + $0xb8] sm:$0xf]
    %v134 = vld [vmem:[#allocation6 + $0xbc] sm:$0xf]
    %v135 = vld [vmem:[#allocation6 + $0xc0] sm:$0xf]
    %v136 = vld [vmem:[#allocation6 + $0xc4] sm:$0xf]
    %v137 = vld [vmem:[#allocation6 + $0xc8] sm:$0xf]
    %v138 = vld [vmem:[#allocation6 + $0xcc] sm:$0xf]
    %v139 = vld [vmem:[#allocation6 + $0xd0] sm:$0xf]
    %v140 = vld [vmem:[#allocation6 + $0xd4] sm:$0xf]
    %v141 = vld [vmem:[#allocation6 + $0xd8] sm:$0xf]
    %v142 = vld [vmem:[#allocation6 + $0xdc] sm:$0xf]
    %v143 = vld [vmem:[#allocation6 + $0xe0] sm:$0xf]
    %v144 = vld [vmem:[#allocation6 + $0xe4] sm:$0xf]
    %v145 = vld [vmem:[#allocation6 + $0xe8] sm:$0xf]
    %v146 = vld [vmem:[#allocation6 + $0xec] sm:$0xf]
    %v147 = vld [vmem:[#allocation6 + $0xf0] sm:$0xf]
    %v148 = vld [vmem:[#allocation6 + $0xf4] sm:$0xf]
    %v149 = vld [vmem:[#allocation6 + $0xf8] sm:$0xf]
    %v150 = vld [vmem:[#allocation6 + $0xfc] sm:$0xf]
    %v151 = vld [vmem:[#allocation6 + $0x100] sm:$0xf]
    %v152 = vld [vmem:[#allocation6 + $0x104] sm:$0xf]
    %v153 = vld [vmem:[#allocation6 + $0x108] sm:$0xf]
    %v154 = vld [vmem:[#allocation6 + $0x10c] sm:$0xf]
    %v155 = vld [vmem:[#allocation6 + $0x110] sm:$0xf]
    %v156 = vld [vmem:[#allocation6 + $0x114] sm:$0xf]
    %v157 = vld [vmem:[#allocation6 + $0x118] sm:$0xf]
    %v158 = vld [vmem:[#allocation6 + $0x11c] sm:$0xf]
    %v159 = vld [vmem:[#allocation6 + $0x120] sm:$0xf]
    %v160 = vld [vmem:[#allocation6 + $0x124] sm:$0xf]
    %v161 = vld [vmem:[#allocation6 + $0x128] sm:$0xf]
    %v162 = vld [vmem:[#allocation6 + $0x12c] sm:$0xf]
    %v163 = vld [vmem:[#allocation6 + $0x130] sm:$0xf]
    %v164 = vld [vmem:[#allocation6 + $0x134] sm:$0xf]
    %v165 = vld [vmem:[#allocation6 + $0x138] sm:$0xf]
    %v166 = vld [vmem:[#allocation6 + $0x13c] sm:$0xf]
    %v167 = vld [vmem:[#allocation6 + $0x140] sm:$0xf]
    %v168 = vld [vmem:[#allocation6 + $0x144] sm:$0xf]
    %v169 = vld [vmem:[#allocation6 + $0x148] sm:$0xf]
    %v170 = vld [vmem:[#allocation6 + $0x14c] sm:$0xf]
    %v171 = vld [vmem:[#allocation6 + $0x150] sm:$0xf]
    %v172 = vld [vmem:[#allocation6 + $0x154] sm:$0xf]
    %v173 = vld [vmem:[#allocation6 + $0x158] sm:$0xf]
    %v174 = vld [vmem:[#allocation6 + $0x15c] sm:$0xf]
    %v175 = vld [vmem:[#allocation6 + $0x160] sm:$0xf]
    %v176 = vld [vmem:[#allocation6 + $0x164] sm:$0xf]
    %v177 = vld [vmem:[#allocation6 + $0x168] sm:$0xf]
    %v178 = vld [vmem:[#allocation6 + $0x16c] sm:$0xf]
    %v179 = vld [vmem:[#allocation6 + $0x170] sm:$0xf]
    %v180 = vld [vmem:[#allocation6 + $0x174] sm:$0xf]
    %v181 = vld [vmem:[#allocation6 + $0x178] sm:$0xf]
    %v182 = vld [vmem:[#allocation6 + $0x17c] sm:$0xf]
    %v183 = vld [vmem:[#allocation6 + $0x180] sm:$0xf]
    %v184 = vld [vmem:[#allocation6 + $0x184] sm:$0xf]
    %v185 = vld [vmem:[#allocation6 + $0x188] sm:$0xf]
    %v186 = vld [vmem:[#allocation6 + $0x18c] sm:$0xf]
    %v187 = vld [vmem:[#allocation6 + $0x190] sm:$0xf]
    %v188 = vld [vmem:[#allocation6 + $0x194] sm:$0xf]
    %v189 = vld [vmem:[#allocation6 + $0x198] sm:$0xf]
    %v190 = vld [vmem:[#allocation6 + $0x19c] sm:$0xf]
    %v191 = vld [vmem:[#allocation6 + $0x1a0] sm:$0xf]
    %v192 = vld [vmem:[#allocation6 + $0x1a4] sm:$0xf]
    %v193 = vld [vmem:[#allocation6 + $0x1a8] sm:$0xf]
    %v194 = vld [vmem:[#allocation6 + $0x1ac] sm:$0xf]
    %v195 = vld [vmem:[#allocation6 + $0x1b0] sm:$0xf]
    %v196 = vld [vmem:[#allocation6 + $0x1b4] sm:$0xf]
    %v197 = vld [vmem:[#allocation6 + $0x1b8] sm:$0xf]
    %v198 = vld [vmem:[#allocation6 + $0x1bc] sm:$0xf]
    %v199 = vld [vmem:[#allocation6 + $0x1c0] sm:$0xf]
    %v200 = vld [vmem:[#allocation6 + $0x1c4] sm:$0xf]
    %v201 = vld [vmem:[#allocation6 + $0x1c8] sm:$0xf]
    %v202 = vld [vmem:[#allocation6 + $0x1cc] sm:$0xf]
    %v203 = vld [vmem:[#allocation6 + $0x1d0] sm:$0xf]
    %v204 = vld [vmem:[#allocation6 + $0x1d4] sm:$0xf]
    %v205 = vld [vmem:[#allocation6 + $0x1d8] sm:$0xf]
    %v206 = vld [vmem:[#allocation6 + $0x1dc] sm:$0xf]
    %v207 = vld [vmem:[#allocation6 + $0x1e0] sm:$0xf]
    %v208 = vld [vmem:[#allocation6 + $0x1e4] sm:$0xf]
    %v209 = vld [vmem:[#allocation6 + $0x1e8] sm:$0xf]
    %v210 = vld [vmem:[#allocation6 + $0x1ec] sm:$0xf]
    %v211 = vld [vmem:[#allocation6 + $0x1f0] sm:$0xf]
    %v212 = vld [vmem:[#allocation6 + $0x1f4] sm:$0xf]
    %v213 = vld [vmem:[#allocation6 + $0x1f8] sm:$0xf]
    %v214 = vld [vmem:[#allocation6 + $0x1fc] sm:$0xf]
    %v343 = vunpack.c.l.b16 %v87
    %v344 = vunpack.c.l.b16 %v88
    %v345 = vunpack.c.l.b16 %v89
    %v346 = vunpack.c.l.b16 %v90
    %v347 = vunpack.c.l.b16 %v91
    %v348 = vunpack.c.l.b16 %v92
    %v349 = vunpack.c.l.b16 %v93
    %v350 = vunpack.c.l.b16 %v94
    %v351 = vunpack.c.l.b16 %v95
    %v352 = vunpack.c.l.b16 %v96
    %v353 = vunpack.c.l.b16 %v97
    %v354 = vunpack.c.l.b16 %v98
    %v355 = vunpack.c.l.b16 %v99
    %v356 = vunpack.c.l.b16 %v100
    %v357 = vunpack.c.l.b16 %v101
    %v358 = vunpack.c.l.b16 %v102
    %v359 = vunpack.c.l.b16 %v103
    %v360 = vunpack.c.l.b16 %v104
    %v361 = vunpack.c.l.b16 %v105
    %v362 = vunpack.c.l.b16 %v106
    %v363 = vunpack.c.l.b16 %v107
    %v364 = vunpack.c.l.b16 %v108
    %v365 = vunpack.c.l.b16 %v109
    %v366 = vunpack.c.l.b16 %v110
    %v367 = vunpack.c.l.b16 %v111
    %v368 = vunpack.c.l.b16 %v112
    %v369 = vunpack.c.l.b16 %v113
    %v370 = vunpack.c.l.b16 %v114
    %v371 = vunpack.c.l.b16 %v115
    %v372 = vunpack.c.l.b16 %v116
    %v373 = vunpack.c.l.b16 %v117
    %v374 = vunpack.c.l.b16 %v118
    %v375 = vunpack.c.l.b16 %v119
    %v376 = vunpack.c.l.b16 %v120
    %v377 = vunpack.c.l.b16 %v121
    %v378 = vunpack.c.l.b16 %v122
    %v379 = vunpack.c.l.b16 %v123
    %v380 = vunpack.c.l.b16 %v124
    %v381 = vunpack.c.l.b16 %v125
    %v382 = vunpack.c.l.b16 %v126
    %v383 = vunpack.c.l.b16 %v127
    %v384 = vunpack.c.l.b16 %v128
    %v385 = vunpack.c.l.b16 %v129
    %v386 = vunpack.c.l.b16 %v130
    %v387 = vunpack.c.l.b16 %v131
    %v388 = vunpack.c.l.b16 %v132
    %v389 = vunpack.c.l.b16 %v133
    %v390 = vunpack.c.l.b16 %v134
    %v391 = vunpack.c.l.b16 %v135
    %v392 = vunpack.c.l.b16 %v136
    %v393 = vunpack.c.l.b16 %v137
    %v394 = vunpack.c.l.b16 %v138
    %v395 = vunpack.c.l.b16 %v139
    %v396 = vunpack.c.l.b16 %v140
    %v397 = vunpack.c.l.b16 %v141
    %v398 = vunpack.c.l.b16 %v142
    %v399 = vunpack.c.l.b16 %v143
    %v400 = vunpack.c.l.b16 %v144
    %v401 = vunpack.c.l.b16 %v145
    %v402 = vunpack.c.l.b16 %v146
    %v403 = vunpack.c.l.b16 %v147
    %v404 = vunpack.c.l.b16 %v148
    %v405 = vunpack.c.l.b16 %v149
    %v406 = vunpack.c.l.b16 %v150
    %v407 = vunpack.c.l.b16 %v151
    %v408 = vunpack.c.l.b16 %v152
    %v409 = vunpack.c.l.b16 %v153
    %v410 = vunpack.c.l.b16 %v154
    %v411 = vunpack.c.l.b16 %v155
    %v412 = vunpack.c.l.b16 %v156
    %v413 = vunpack.c.l.b16 %v157
    %v414 = vunpack.c.l.b16 %v158
    %v415 = vunpack.c.l.b16 %v159
    %v416 = vunpack.c.l.b16 %v160
    %v417 = vunpack.c.l.b16 %v161
    %v418 = vunpack.c.l.b16 %v162
    %v419 = vunpack.c.l.b16 %v163
    %v420 = vunpack.c.l.b16 %v164
    %v421 = vunpack.c.l.b16 %v165
    %v422 = vunpack.c.l.b16 %v166
    %v423 = vunpack.c.l.b16 %v167
    %v424 = vunpack.c.l.b16 %v168
    %v425 = vunpack.c.l.b16 %v169
    %v426 = vunpack.c.l.b16 %v170
    %v427 = vunpack.c.l.b16 %v171
    %v428 = vunpack.c.l.b16 %v172
    %v429 = vunpack.c.l.b16 %v173
    %v430 = vunpack.c.l.b16 %v174
    %v431 = vunpack.c.l.b16 %v175
    %v432 = vunpack.c.l.b16 %v176
    %v433 = vunpack.c.l.b16 %v177
    %v434 = vunpack.c.l.b16 %v178
    %v435 = vunpack.c.l.b16 %v179
    %v436 = vunpack.c.l.b16 %v180
    %v437 = vunpack.c.l.b16 %v181
    %v438 = vunpack.c.l.b16 %v182
    %v439 = vunpack.c.l.b16 %v183
    %v440 = vunpack.c.l.b16 %v184
    %v441 = vunpack.c.l.b16 %v185
    %v442 = vunpack.c.l.b16 %v186
    %v443 = vunpack.c.l.b16 %v187
    %v444 = vunpack.c.l.b16 %v188
    %v445 = vunpack.c.l.b16 %v189
    %v446 = vunpack.c.l.b16 %v190
    %v447 = vunpack.c.l.b16 %v191
    %v448 = vunpack.c.l.b16 %v192
    %v449 = vunpack.c.l.b16 %v193
    %v450 = vunpack.c.l.b16 %v194
    %v451 = vunpack.c.l.b16 %v195
    %v452 = vunpack.c.l.b16 %v196
    %v453 = vunpack.c.l.b16 %v197
    %v454 = vunpack.c.l.b16 %v198
    %v455 = vunpack.c.l.b16 %v199
    %v456 = vunpack.c.l.b16 %v200
    %v457 = vunpack.c.l.b16 %v201
    %v458 = vunpack.c.l.b16 %v202
    %v459 = vunpack.c.l.b16 %v203
    %v460 = vunpack.c.l.b16 %v204
    %v461 = vunpack.c.l.b16 %v205
    %v462 = vunpack.c.l.b16 %v206
    %v463 = vunpack.c.l.b16 %v207
    %v464 = vunpack.c.l.b16 %v208
    %v465 = vunpack.c.l.b16 %v209
    %v466 = vunpack.c.l.b16 %v210
    %v467 = vunpack.c.l.b16 %v211
    %v468 = vunpack.c.l.b16 %v212
    %v469 = vunpack.c.l.b16 %v213
    %v470 = vunpack.c.l.b16 %v214
    %v471 = vpack.c.b16 %v344, %v343
    %v472 = vpack.c.b16 %v346, %v345
    %v473 = vpack.c.b16 %v348, %v347
    %v474 = vpack.c.b16 %v350, %v349
    %v475 = vpack.c.b16 %v352, %v351
    %v476 = vpack.c.b16 %v354, %v353
    %v477 = vpack.c.b16 %v356, %v355
    %v478 = vpack.c.b16 %v358, %v357
    %v479 = vpack.c.b16 %v360, %v359
    %v480 = vpack.c.b16 %v362, %v361
    %v481 = vpack.c.b16 %v364, %v363
    %v482 = vpack.c.b16 %v366, %v365
    %v483 = vpack.c.b16 %v368, %v367
    %v484 = vpack.c.b16 %v370, %v369
    %v485 = vpack.c.b16 %v372, %v371
    %v486 = vpack.c.b16 %v374, %v373
    %v487 = vpack.c.b16 %v376, %v375
    %v488 = vpack.c.b16 %v378, %v377
    %v489 = vpack.c.b16 %v380, %v379
    %v490 = vpack.c.b16 %v382, %v381
    %v491 = vpack.c.b16 %v384, %v383
    %v492 = vpack.c.b16 %v386, %v385
    %v493 = vpack.c.b16 %v388, %v387
    %v494 = vpack.c.b16 %v390, %v389
    %v495 = vpack.c.b16 %v392, %v391
    %v496 = vpack.c.b16 %v394, %v393
    %v497 = vpack.c.b16 %v396, %v395
    %v498 = vpack.c.b16 %v398, %v397
    %v499 = vpack.c.b16 %v400, %v399
    %v500 = vpack.c.b16 %v402, %v401
    %v501 = vpack.c.b16 %v404, %v403
    %v502 = vpack.c.b16 %v406, %v405
    %v503 = vpack.c.b16 %v408, %v407
    %v504 = vpack.c.b16 %v410, %v409
    %v505 = vpack.c.b16 %v412, %v411
    %v506 = vpack.c.b16 %v414, %v413
    %v507 = vpack.c.b16 %v416, %v415
    %v508 = vpack.c.b16 %v418, %v417
    %v509 = vpack.c.b16 %v420, %v419
    %v510 = vpack.c.b16 %v422, %v421
    %v511 = vpack.c.b16 %v424, %v423
    %v512 = vpack.c.b16 %v426, %v425
    %v513 = vpack.c.b16 %v428, %v427
    %v514 = vpack.c.b16 %v430, %v429
    %v515 = vpack.c.b16 %v432, %v431
    %v516 = vpack.c.b16 %v434, %v433
    %v517 = vpack.c.b16 %v436, %v435
    %v518 = vpack.c.b16 %v438, %v437
    %v519 = vpack.c.b16 %v440, %v439
    %v520 = vpack.c.b16 %v442, %v441
    %v521 = vpack.c.b16 %v444, %v443
    %v522 = vpack.c.b16 %v446, %v445
    %v523 = vpack.c.b16 %v448, %v447
    %v524 = vpack.c.b16 %v450, %v449
    %v525 = vpack.c.b16 %v452, %v451
    %v526 = vpack.c.b16 %v454, %v453
    %v527 = vpack.c.b16 %v456, %v455
    %v528 = vpack.c.b16 %v458, %v457
    %v529 = vpack.c.b16 %v460, %v459
    %v530 = vpack.c.b16 %v462, %v461
    %v531 = vpack.c.b16 %v464, %v463
    %v532 = vpack.c.b16 %v466, %v465
    %v533 = vpack.c.b16 %v468, %v467
    %v534 = vpack.c.b16 %v470, %v469
    %599 = vmatprep.subr.bf16.mxu0 0
    %600 = vmatpush1.bf16.msra.mxu0 %v471
    %601 = vmatprep.subr.bf16.mxu0 0
    %602 = vmatpush1.bf16.msra.mxu0 %v472
    %603 = vmatprep.subr.bf16.mxu0 0
    %604 = vmatpush1.bf16.msra.mxu0 %v473
    %605 = vmatprep.subr.bf16.mxu0 0
    %606 = vmatpush1.bf16.msra.mxu0 %v474
    %607 = vmatprep.subr.bf16.mxu0 0
    %608 = vmatpush1.bf16.msra.mxu0 %v475
    %609 = vmatprep.subr.bf16.mxu0 0
    %610 = vmatpush1.bf16.msra.mxu0 %v476
    %611 = vmatprep.subr.bf16.mxu0 0
    %612 = vmatpush1.bf16.msra.mxu0 %v477
    %613 = vmatprep.subr.bf16.mxu0 0
    %614 = vmatpush1.bf16.msra.mxu0 %v478
    %615 = vmatprep.subr.bf16.mxu0 0
    %616 = vmatpush1.bf16.msra.mxu0 %v479
    %617 = vmatprep.subr.bf16.mxu0 0
    %618 = vmatpush1.bf16.msra.mxu0 %v480
    %619 = vmatprep.subr.bf16.mxu0 0
    %620 = vmatpush1.bf16.msra.mxu0 %v481
    %621 = vmatprep.subr.bf16.mxu0 0
    %622 = vmatpush1.bf16.msra.mxu0 %v482
    %623 = vmatprep.subr.bf16.mxu0 0
    %624 = vmatpush1.bf16.msra.mxu0 %v483
    %625 = vmatprep.subr.bf16.mxu0 0
    %626 = vmatpush1.bf16.msra.mxu0 %v484
    %627 = vmatprep.subr.bf16.mxu0 0
    %628 = vmatpush1.bf16.msra.mxu0 %v485
    %629 = vmatprep.subr.bf16.mxu0 0
    %630 = vmatpush1.bf16.msra.mxu0 %v486
    %631 = vmatprep.mubr.bf16.mxu0 %v80
    %632 = vmatmul.mubr.bf16.gmra.mrb[0].mxu0 %v79
    %v633 = vpop.f32.mrb[0].mxu0
    %v634 = vadd.f32 0.0, %v633
    %v635 = vpop.f32.mrb[0].mxu0
    %v636 = vpop.f32.mrb[0].mxu0
    %v637 = vpop.f32.mrb[0].mxu0
    %638 = vdwg.mxu0
    %639 = vmatprep.subr.bf16.mxu0 0
    %640 = vmatpush1.bf16.msra.mxu0 %v487
    %641 = vmatprep.subr.bf16.mxu0 0
    %642 = vmatpush1.bf16.msra.mxu0 %v488
    %643 = vmatprep.subr.bf16.mxu0 0
    %644 = vmatpush1.bf16.msra.mxu0 %v489
    %645 = vmatprep.subr.bf16.mxu0 0
    %646 = vmatpush1.bf16.msra.mxu0 %v490
    %647 = vmatprep.subr.bf16.mxu0 0
    %648 = vmatpush1.bf16.msra.mxu0 %v491
    %649 = vmatprep.subr.bf16.mxu0 0
    %650 = vmatpush1.bf16.msra.mxu0 %v492
    %651 = vmatprep.subr.bf16.mxu0 0
    %652 = vmatpush1.bf16.msra.mxu0 %v493
    %653 = vmatprep.subr.bf16.mxu0 0
    %654 = vmatpush1.bf16.msra.mxu0 %v494
    %655 = vmatprep.subr.bf16.mxu0 0
    %656 = vmatpush1.bf16.msra.mxu0 %v495
    %657 = vmatprep.subr.bf16.mxu0 0
    %658 = vmatpush1.bf16.msra.mxu0 %v496
    %659 = vmatprep.subr.bf16.mxu0 0
    %660 = vmatpush1.bf16.msra.mxu0 %v497
    %661 = vmatprep.subr.bf16.mxu0 0
    %662 = vmatpush1.bf16.msra.mxu0 %v498
    %663 = vmatprep.subr.bf16.mxu0 0
    %664 = vmatpush1.bf16.msra.mxu0 %v499
    %665 = vmatprep.subr.bf16.mxu0 0
    %666 = vmatpush1.bf16.msra.mxu0 %v500
    %667 = vmatprep.subr.bf16.mxu0 0
    %668 = vmatpush1.bf16.msra.mxu0 %v501
    %669 = vmatprep.subr.bf16.mxu0 0
    %670 = vmatpush1.bf16.msra.mxu0 %v502
    %671 = vmatprep.mubr.bf16.mxu0 %v82
    %672 = vmatmul.mubr.bf16.gmra.mrb[0].mxu0 %v81
    %v673 = vpop.f32.mrb[0].mxu0
    %v674 = vadd.f32 %v634, %v673
    %v675 = vpop.f32.mrb[0].mxu0
    %v676 = vpop.f32.mrb[0].mxu0
    %v677 = vpop.f32.mrb[0].mxu0
    %678 = vdwg.mxu0
    %679 = vmatprep.subr.bf16.mxu0 0
    %680 = vmatpush1.bf16.msra.mxu0 %v503
    %681 = vmatprep.subr.bf16.mxu0 0
    %682 = vmatpush1.bf16.msra.mxu0 %v504
    %683 = vmatprep.subr.bf16.mxu0 0
    %684 = vmatpush1.bf16.msra.mxu0 %v505
    %685 = vmatprep.subr.bf16.mxu0 0
    %686 = vmatpush1.bf16.msra.mxu0 %v506
    %687 = vmatprep.subr.bf16.mxu0 0
    %688 = vmatpush1.bf16.msra.mxu0 %v507
    %689 = vmatprep.subr.bf16.mxu0 0
    %690 = vmatpush1.bf16.msra.mxu0 %v508
    %691 = vmatprep.subr.bf16.mxu0 0
    %692 = vmatpush1.bf16.msra.mxu0 %v509
    %693 = vmatprep.subr.bf16.mxu0 0
    %694 = vmatpush1.bf16.msra.mxu0 %v510
    %695 = vmatprep.subr.bf16.mxu0 0
    %696 = vmatpush1.bf16.msra.mxu0 %v511
    %697 = vmatprep.subr.bf16.mxu0 0
    %698 = vmatpush1.bf16.msra.mxu0 %v512
    %699 = vmatprep.subr.bf16.mxu0 0
    %700 = vmatpush1.bf16.msra.mxu0 %v513
    %701 = vmatprep.subr.bf16.mxu0 0
    %702 = vmatpush1.bf16.msra.mxu0 %v514
    %703 = vmatprep.subr.bf16.mxu0 0
    %704 = vmatpush1.bf16.msra.mxu0 %v515
    %705 = vmatprep.subr.bf16.mxu0 0
    %706 = vmatpush1.bf16.msra.mxu0 %v516
    %707 = vmatprep.subr.bf16.mxu0 0
    %708 = vmatpush1.bf16.msra.mxu0 %v517
    %709 = vmatprep.subr.bf16.mxu0 0
    %710 = vmatpush1.bf16.msra.mxu0 %v518
    %711 = vmatprep.mubr.bf16.mxu0 %v84
    %712 = vmatmul.mubr.bf16.gmra.mrb[0].mxu0 %v83
    %v713 = vpop.f32.mrb[0].mxu0
    %v714 = vadd.f32 %v674, %v713
    %v715 = vpop.f32.mrb[0].mxu0
    %v716 = vpop.f32.mrb[0].mxu0
    %v717 = vpop.f32.mrb[0].mxu0
    %718 = vdwg.mxu0
    %719 = vmatprep.subr.bf16.mxu0 0
    %720 = vmatpush1.bf16.msra.mxu0 %v519
    %721 = vmatprep.subr.bf16.mxu0 0
    %722 = vmatpush1.bf16.msra.mxu0 %v520
    %723 = vmatprep.subr.bf16.mxu0 0
    %724 = vmatpush1.bf16.msra.mxu0 %v521
    %725 = vmatprep.subr.bf16.mxu0 0
    %726 = vmatpush1.bf16.msra.mxu0 %v522
    %727 = vmatprep.subr.bf16.mxu0 0
    %728 = vmatpush1.bf16.msra.mxu0 %v523
    %729 = vmatprep.subr.bf16.mxu0 0
    %730 = vmatpush1.bf16.msra.mxu0 %v524
    %731 = vmatprep.subr.bf16.mxu0 0
    %732 = vmatpush1.bf16.msra.mxu0 %v525
    %733 = vmatprep.subr.bf16.mxu0 0
    %734 = vmatpush1.bf16.msra.mxu0 %v526
    %735 = vmatprep.subr.bf16.mxu0 0
    %736 = vmatpush1.bf16.msra.mxu0 %v527
    %737 = vmatprep.subr.bf16.mxu0 0
    %738 = vmatpush1.bf16.msra.mxu0 %v528
    %739 = vmatprep.subr.bf16.mxu0 0
    %740 = vmatpush1.bf16.msra.mxu0 %v529
    %741 = vmatprep.subr.bf16.mxu0 0
    %742 = vmatpush1.bf16.msra.mxu0 %v530
    %743 = vmatprep.subr.bf16.mxu0 0
    %744 = vmatpush1.bf16.msra.mxu0 %v531
    %745 = vmatprep.subr.bf16.mxu0 0
    %746 = vmatpush1.bf16.msra.mxu0 %v532
    %747 = vmatprep.subr.bf16.mxu0 0
    %748 = vmatpush1.bf16.msra.mxu0 %v533
    %749 = vmatprep.subr.bf16.mxu0 0
    %750 = vmatpush1.bf16.msra.mxu0 %v534
    %751 = vmatprep.mubr.bf16.mxu0 %v86
    %752 = vmatmul.mubr.bf16.gmra.mrb[0].mxu0 %v85
    %v753 = vpop.f32.mrb[0].mxu0
    %v754 = vadd.f32 %v714, %v753
    %v755 = vpop.f32.mrb[0].mxu0
    %v756 = vpop.f32.mrb[0].mxu0
    %v757 = vpop.f32.mrb[0].mxu0
    %758 = vdwg.mxu0
    %v759 = vadd.f32 %v70, %v754
    %760 = vst [vmem:[#allocation2] sm:$0xff] %v759
    // Predicated region
    $region34: #{tpu_custom_call.1} parent=1 // pred_check
      %p761 = pneg %p58
    $region35: #{tpu_custom_call.1} parent=1 // pred_check_branch
      %763 = sbr.rel (%p761) target = $region37
    $region36: #{tpu_custom_call.1} parent=1 // pred_region
      %v764 = vld [vmem:[#allocation2] sm:$0xff]
      %v765 = vmul.f32 %v764, %v764
      %766 = vadd.xlane.f32.xlu0 %v765
      %v767 = vpop.xlane.xlu0 %766
      %v768 = vmax.f32 %v767, 1e-24
      %v769 = vrsqrt.pop %v768
      %v770 = vmul.f32 %v764, %v769
      %v771 = vpack.c.bf16 %v770, %v770
      %v772 = vld [vmem:[#allocation8] sm:$0xf]
      %v773 = vld [vmem:[#allocation8 + $0x4] sm:$0xf]
      %v774 = vld [vmem:[#allocation8 + $0x8] sm:$0xf]
      %v775 = vld [vmem:[#allocation8 + $0xc] sm:$0xf]
      %v776 = vld [vmem:[#allocation8 + $0x10] sm:$0xf]
      %v777 = vld [vmem:[#allocation8 + $0x14] sm:$0xf]
      %v778 = vld [vmem:[#allocation8 + $0x18] sm:$0xf]
      %v779 = vld [vmem:[#allocation8 + $0x1c] sm:$0xf]
      %v780 = vld [vmem:[#allocation8 + $0x20] sm:$0xf]
      %v781 = vld [vmem:[#allocation8 + $0x24] sm:$0xf]
      %v782 = vld [vmem:[#allocation8 + $0x28] sm:$0xf]
      %v783 = vld [vmem:[#allocation8 + $0x2c] sm:$0xf]
      %v784 = vld [vmem:[#allocation8 + $0x30] sm:$0xf]
      %v785 = vld [vmem:[#allocation8 + $0x34] sm:$0xf]
      %v786 = vld [vmem:[#allocation8 + $0x38] sm:$0xf]
      %v787 = vld [vmem:[#allocation8 + $0x3c] sm:$0xf]
      %v804 = vunpack.c.l.b16 %v772
      %v805 = vunpack.c.l.b16 %v773
      %v806 = vunpack.c.l.b16 %v774
      %v807 = vunpack.c.l.b16 %v775
      %v808 = vunpack.c.l.b16 %v776
      %v809 = vunpack.c.l.b16 %v777
      %v810 = vunpack.c.l.b16 %v778
      %v811 = vunpack.c.l.b16 %v779
      %v812 = vunpack.c.l.b16 %v780
      %v813 = vunpack.c.l.b16 %v781
      %v814 = vunpack.c.l.b16 %v782
      %v815 = vunpack.c.l.b16 %v783
      %v816 = vunpack.c.l.b16 %v784
      %v817 = vunpack.c.l.b16 %v785
      %v818 = vunpack.c.l.b16 %v786
      %v819 = vunpack.c.l.b16 %v787
      %v820 = vpack.c.b16 %v805, %v804
      %v821 = vpack.c.b16 %v807, %v806
      %v822 = vpack.c.b16 %v809, %v808
      %v823 = vpack.c.b16 %v811, %v810
      %v824 = vpack.c.b16 %v813, %v812
      %v825 = vpack.c.b16 %v815, %v814
      %v826 = vpack.c.b16 %v817, %v816
      %v827 = vpack.c.b16 %v819, %v818
      %836 = vmatprep.subr.bf16.mxu0 0
      %837 = vmatpush1.bf16.msra.mxu0 %v820
      %838 = vmatprep.subr.bf16.mxu0 0
      %839 = vmatpush1.bf16.msra.mxu0 %v821
      %840 = vmatprep.subr.bf16.mxu0 0
      %841 = vmatpush1.bf16.msra.mxu0 %v822
      %842 = vmatprep.subr.bf16.mxu0 0
      %843 = vmatpush1.bf16.msra.mxu0 %v823
      %844 = vmatprep.subr.bf16.mxu0 0
      %845 = vmatpush1.bf16.msra.mxu0 %v824
      %846 = vmatprep.subr.bf16.mxu0 0
      %847 = vmatpush1.bf16.msra.mxu0 %v825
      %848 = vmatprep.subr.bf16.mxu0 0
      %849 = vmatpush1.bf16.msra.mxu0 %v826
      %850 = vmatprep.subr.bf16.mxu0 0
      %851 = vmatpush1.bf16.msra.mxu0 %v827
      %852 = vmatprep.subr.bf16.mxu0 0
      %853 = vmatpush1.bf16.msra.mxu0 0
      %854 = vmatprep.subr.bf16.mxu0 0
      %855 = vmatpush1.bf16.msra.mxu0 0
      %856 = vmatprep.subr.bf16.mxu0 0
      %857 = vmatpush1.bf16.msra.mxu0 0
      %858 = vmatprep.subr.bf16.mxu0 0
      %859 = vmatpush1.bf16.msra.mxu0 0
      %860 = vmatprep.subr.bf16.mxu0 0
      %861 = vmatpush1.bf16.msra.mxu0 0
      %862 = vmatprep.subr.bf16.mxu0 0
      %863 = vmatpush1.bf16.msra.mxu0 0
      %864 = vmatprep.subr.bf16.mxu0 0
      %865 = vmatpush1.bf16.msra.mxu0 0
      %866 = vmatprep.subr.bf16.mxu0 0
      %867 = vmatpush1.bf16.msra.mxu0 0
      %868 = vmatprep.mubr.bf16.mxu0 0
      %869 = vmatmul.mubr.bf16.gmra.mrb[0].mxu0 %v771
      %v870 = vpop.f32.mrb[0].mxu0
      %v871 = vadd.f32 0.0, %v870
      %v872 = vpop.f32.mrb[0].mxu0
      %v873 = vpop.f32.mrb[0].mxu0
      %v874 = vpop.f32.mrb[0].mxu0
      %875 = vdwg.mxu0
      %876 = vst [vmem:[#allocation9] sm:$0xff] %v871
    $region37: #{tpu_custom_call.1} parent=1 // pred_fallthru
      _
    // Predicated region
    $region38: #{tpu_custom_call.1} parent=1 // pred_check
      _
    $region39: #{tpu_custom_call.1} parent=1 // pred_check_branch
      %878 = sbr.rel (0) target = $region41
    $region40: #{tpu_custom_call.1} parent=1 // pred_region
      %s880 = ssub.s32 128, 128
      %881 = vsyncadd [#allocation5], %s880
      %s883 = sshll.u32 [#allocation9], 4
      %s884 = int_to_ptr.vmem [resolvable:$true] %s883
      %886 = dma.vmem_to_hbm [thread:$0]  %s884, 128, %s4, [#allocation5]
    $region41: #{tpu_custom_call.1} parent=1 // pred_fallthru
      _
    // Predicated region
    $region42: #{tpu_custom_call.1} parent=1 // pred_check
      _
    $region43: #{tpu_custom_call.1} parent=1 // pred_check_branch
      %888 = sbr.rel (0) target = $region45
    $region44: #{tpu_custom_call.1} parent=1 // pred_region
      %889 = dma.done [#allocation5], 128
    $region45: #{tpu_custom_call.1} parent=1 // pred_fallthru
      _
    %890 = vsyncpa [#allocation4], 1
    %891 = vsyncpa [#allocation7], 1
    %892 = vsyncpa [#allocation5], 1

</llo_original>
